<compile_context>
chip_gen: v6e
topology: v6e:2x2x1
jax: 0.10.0
libtpu: 0.0.40
codegen_flags: <defaults>
</compile_context>

<pallas_src>
import functools

import numpy as np
import jax
import jax.numpy as jnp
from jax.experimental import pallas as pl
from jax.experimental.pallas import tpu as pltpu

SPARSITY = 0.01     # softshrink lambda
NEG_SLOPE = 0.01    # torch.nn.LeakyReLU default


def _softshrink(v, lam):
    return jnp.where(v > lam, v - lam,
                     jnp.where(v < -lam, v + lam, jnp.zeros_like(v)))


def _fs(shape):
    """Full-array BlockSpec for a grid of (1,)."""
    rank = len(shape)
    return pl.BlockSpec(shape, lambda i, _r=rank: (0,) * _r)


# ----------------------------------------------------------------------------
# Single fused kernel
# ----------------------------------------------------------------------------
def _fgn_kernel(M, E, J, xflat_ref, emb_ref, cb_ref, pw_ref, a_ref,
                w1p_ref, w2_ref, w3m_ref, cpk_ref, out_ref):
    # xflat_ref: (B*NL, 1)      flattened, permuted input
    # emb_ref:   (1, E)         token embedding row
    # cb_ref:    (2, B*F, B*NL) block-diag ortho rfft matrices (real, imag)
    # pw_ref:    (12, E)        [w1r,w1i,b1r,b1i,w2r,w2i,b2r,b2i,w3r,w3i,b3r,b3i]
    # a_ref:     (2, J*M, B*F)  fused irfft+permute+e10 matrices (real, imag)
    # w1p_ref:   (J*E, K1)      fc W1 with rows re-ordered j-major
    # w2_ref:    (K1, H)
    # w3m_ref:   (H, 1)         column-mean of fc W3 (folds the final mean)
    # cpk_ref:   (3, K1)        row0 = c1, row1[:H] = c2, row2[0] = mean(c3)
    # out_ref:   (M, 1)         M = B*N
    f32 = jnp.float32
    K1 = w1p_ref.shape[1]
    H = w2_ref.shape[1]

    # tokenEmb for all batches at once: (B*NL, 1) * (1, E) -> (B*NL, E)
    xe = xflat_ref[...] * emb_ref[...]

    # Batched ortho rfft as two block-diagonal matmuls; rows are (b, f).
    xr = jnp.dot(cb_ref[0], xe, preferred_element_type=f32)   # (B*F, E)
    xi = jnp.dot(cb_ref[1], xe, preferred_element_type=f32)   # (B*F, E)
    # TODO(synk): filter_mask is random-but-always-True in the reference;
    # implemented as the identity (deterministic) instead of sampling.

    w1r, w1i = pw_ref[0:1, :], pw_ref[1:2, :]
    b1r, b1i = pw_ref[2:3, :], pw_ref[3:4, :]
    w2r, w2i = pw_ref[4:5, :], pw_ref[5:6, :]
    b2r, b2i = pw_ref[6:7, :], pw_ref[7:8, :]
    w3r, w3i = pw_ref[8:9, :], pw_ref[9:10, :]
    b3r, b3i = pw_ref[10:11, :], pw_ref[11:12, :]

    # fourierGC (elementwise; diag-weight "einsum('bli,ii->bli')").
    o1r = jnp.maximum(xr * w1r - xi * w1i + b1r, 0.0)
    o1i = jnp.maximum(xi * w1r + xr * w1i + b1i, 0.0)
    yr = _softshrink(o1r, SPARSITY)
    yi = _softshrink(o1i, SPARSITY)

    o2r = jnp.maximum(o1r * w2r - o1i * w2i + b2r, 0.0)
    o2i = jnp.maximum(o1i * w2r + o1r * w2i + b2i, 0.0)
    x2r = _softshrink(o2r, SPARSITY) + yr
    x2i = _softshrink(o2i, SPARSITY) + yi

    o3r = jnp.maximum(o2r * w3r - o2i * w3i + b3r, 0.0)
    o3i = jnp.maximum(o2i * w3r + o2r * w3i + b3i, 0.0)
    zr = _softshrink(o3r, SPARSITY) + x2r + xr   # + bias (pre-GC spectrum)
    zi = _softshrink(o3i, SPARSITY) + x2i + xi

    # Fused irfft + (B,N,L,E)->(B,N,E,L) permute + embeddings_10 projection:
    #   p2[j*M + (b*N + n), e] = proj[b, n, e, j]
    p2 = (jnp.dot(a_ref[0], zr, preferred_element_type=f32)
          + jnp.dot(a_ref[1], zi, preferred_element_type=f32))   # (J*M, E)

    # fc layer 1: consume the j-blocked rows of p2 against the j-major W1.
    h1 = jnp.dot(p2[0:M, :], w1p_ref[0:E, :], preferred_element_type=f32)
    for j in range(1, J):
        h1 = h1 + jnp.dot(p2[j * M:(j + 1) * M, :],
                          w1p_ref[j * E:(j + 1) * E, :],
                          preferred_element_type=f32)
    h1 = h1 + cpk_ref[0:1, :]
    h1 = jnp.where(h1 > 0, h1, NEG_SLOPE * h1)

    h2 = jnp.dot(h1, w2_ref[...], preferred_element_type=f32) + cpk_ref[1:2, 0:H]
    h2 = jnp.where(h2 > 0, h2, NEG_SLOPE * h2)

    # Final Linear(H, P) + mean(-1), folded into one matvec.
    out = (jnp.dot(h2, w3m_ref[...], preferred_element_type=f32)
           + cpk_ref[2:3, 0:1])
    out_ref[...] = out


# ----------------------------------------------------------------------------
# Trace-time constants (numpy; constant-folded under jit)
# ----------------------------------------------------------------------------
def _dft_constants(B, N, L):
    NL = N * L
    F = NL // 2 + 1
    C = np.fft.rfft(np.eye(NL), axis=-1, norm="ortho")            # (NL, F)
    Cr = np.ascontiguousarray(C.real.T)                           # (F, NL)
    Ci = np.ascontiguousarray(C.imag.T)
    eye_f = np.eye(F, dtype=np.complex128)
    Dr = np.fft.irfft(eye_f, n=NL, axis=-1, norm="ortho").T       # (NL, F)
    Di = np.fft.irfft(1j * eye_f, n=NL, axis=-1, norm="ortho").T
    CB = np.stack([np.kron(np.eye(B), Cr),
                   np.kron(np.eye(B), Ci)]).astype(np.float32)    # (2,B*F,B*NL)
    return CB, Dr.astype(np.float32), Di.astype(np.float32)


# ----------------------------------------------------------------------------
# Wrapper (parameter folding / packing; call under jax.jit)
# ----------------------------------------------------------------------------
def fgn_forward(x, params):
    B, L, N = x.shape
    E = params["emb"].shape[1]
    J = params["e10"].shape[1]            # = 8
    K1 = params["W1"].shape[1]
    H = params["W2"].shape[1]
    NL = N * L
    F = NL // 2 + 1
    M = B * N
    f32 = jnp.float32

    CB, Dr, Di = _dft_constants(B, N, L)

    # Fused irfft + permute + e10 matrices: A?[(j,b,n), (b',f)] = I[b,b'] * G?[n,j,f]
    e10 = params["e10"].astype(f32)
    eyeB = jnp.eye(B, dtype=f32)
    Gr = jnp.einsum("nlf,lj->njf", jnp.asarray(Dr.reshape(N, L, F)), e10)
    Gi = jnp.einsum("nlf,lj->njf", jnp.asarray(Di.reshape(N, L, F)), e10)
    Ar = jnp.einsum("njf,bc->jbncf", Gr, eyeB).reshape(J * M, B * F)
    Ai = jnp.einsum("njf,bc->jbncf", Gi, eyeB).reshape(J * M, B * F)
    A = jnp.stack([Ar, Ai])                                        # (2, J*M, B*F)

    # Packed fourierGC parameters (diagonals + biases) -> (12, E).
    w1d = jnp.diagonal(params["w1"], axis1=1, axis2=2).astype(f32)
    w2d = jnp.diagonal(params["w2"], axis1=1, axis2=2).astype(f32)
    w3d = jnp.diagonal(params["w3"], axis1=1, axis2=2).astype(f32)
    PW = jnp.concatenate([w1d, params["b1"].astype(f32),
                          w2d, params["b2"].astype(f32),
                          w3d, params["b3"].astype(f32)], axis=0)  # (12, E)

    # fc parameters: W1 re-ordered j-major; W3 + mean folded; biases packed.
    W1p = (params["W1"].astype(f32).reshape(E, J, K1)
           .transpose(1, 0, 2).reshape(J * E, K1))                 # (J*E, K1)
    W2 = params["W2"].astype(f32)
    W3m = params["W3"].astype(f32).mean(axis=1, keepdims=True)     # (H, 1)
    cpk = jnp.zeros((3, K1), f32)
    cpk = cpk.at[0, :].set(params["c1"].astype(f32)[0])
    cpk = cpk.at[1, :H].set(params["c2"].astype(f32)[0])
    cpk = cpk.at[2, 0].set(jnp.mean(params["c3"].astype(f32)))

    # permute(0,2,1) + flatten -> (B*NL, 1)
    xflat = jnp.transpose(x.astype(f32), (0, 2, 1)).reshape(B * NL, 1)
    emb = params["emb"].astype(f32)

    inputs = (xflat, emb, jnp.asarray(CB), PW, A, W1p, W2, W3m, cpk)

    out = pl.pallas_call(
        functools.partial(_fgn_kernel, M, E, J),
        grid=(1,),
        in_specs=[_fs(a.shape) for a in inputs],
        out_specs=_fs((M, 1)),
        out_shape=jax.ShapeDtypeStruct((M, 1), jnp.float32),
        compiler_params=pltpu.CompilerParams(
            dimension_semantics=("arbitrary",)),
    )(*inputs)

    return out.reshape(B, N)


# ----------------------------------------------------------------------------
# Pure-JAX reference (uses jnp.fft directly) for a numerical sanity check.
# ----------------------------------------------------------------------------
def fgn_reference(x, params):
    B, L, N = x.shape
    E = params["emb"].shape[1]
    NL = N * L
    xp = jnp.transpose(x, (0, 2, 1)).reshape(B, NL)
    xt = xp[:, :, None] * params["emb"]                          # (B, NL, E)
    Xf = jnp.fft.rfft(xt, axis=1, norm="ortho")                  # (B, F, E)
    xr, xi = Xf.real, Xf.imag                                    # mask == identity
    w1d = jnp.diagonal(params["w1"], axis1=1, axis2=2)
    w2d = jnp.diagonal(params["w2"], axis1=1, axis2=2)
    w3d = jnp.diagonal(params["w3"], axis1=1, axis2=2)
    b1, b2, b3 = params["b1"], params["b2"], params["b3"]
    ss = lambda v: _softshrink(v, SPARSITY)

    o1r = jax.nn.relu(xr * w1d[0] - xi * w1d[1] + b1[0])
    o1i = jax.nn.relu(xi * w1d[0] + xr * w1d[1] + b1[1])
    yr, yi = ss(o1r), ss(o1i)
    o2r = jax.nn.relu(o1r * w2d[0] - o1i * w2d[1] + b2[0])
    o2i = jax.nn.relu(o1i * w2d[0] + o1r * w2d[1] + b2[1])
    x2r, x2i = ss(o2r) + yr, ss(o2i) + yi
    o3r = jax.nn.relu(o2r * w3d[0] - o2i * w3d[1] + b3[0])
    o3i = jax.nn.relu(o2i * w3d[0] + o2r * w3d[1] + b3[1])
    zr, zi = ss(o3r) + x2r, ss(o3i) + x2i

    z = (zr + xr) + 1j * (zi + xi)
    xt2 = jnp.fft.irfft(z, n=NL, axis=1, norm="ortho")           # (B, NL, E)
    xt2 = xt2.reshape(B, N, L, E).transpose(0, 1, 3, 2)          # (B, N, E, L)
    u = jnp.matmul(xt2, params["e10"]).reshape(B, N, E * 8)
    h = jax.nn.leaky_relu(u @ params["W1"] + params["c1"][0], NEG_SLOPE)
    h = jax.nn.leaky_relu(h @ params["W2"] + params["c2"][0], NEG_SLOPE)
    h = h @ params["W3"] + params["c3"][0]
    return h.mean(-1)


if __name__ == "__main__":
    # Small shapes consistent with the module:
    B, L, N = 2, 8, 4        # batch, seq_length, feature_size
    E = 32                   # embed_size (= frequency_size, number_frequency=1)
    H = 32                   # hidden_size
    P = 4                    # pre_length

    key = jax.random.PRNGKey(0)
    ks = jax.random.split(key, 16)
    x = jax.random.normal(ks[0], (B, L, N), jnp.float32)

    params = {
        "emb": jax.random.normal(ks[1], (1, E), jnp.float32),
        "w1": 0.02 * jax.random.normal(ks[2], (2, E, E), jnp.float32),
        "b1": 0.02 * jax.random.normal(ks[3], (2, E), jnp.float32),
        "w2": 0.02 * jax.random.normal(ks[4], (2, E, E), jnp.float32),
        "b2": 0.02 * jax.random.normal(ks[5], (2, E), jnp.float32),
        "w3": 0.02 * jax.random.normal(ks[6], (2, E, E), jnp.float32),
        "b3": 0.02 * jax.random.normal(ks[7], (2, E), jnp.float32),
        "e10": jax.random.normal(ks[8], (L, 8), jnp.float32),
        "W1": 0.05 * jax.random.normal(ks[9], (E * 8, 64), jnp.float32),
        "c1": 0.01 * jax.random.normal(ks[10], (1, 64), jnp.float32),
        "W2": 0.05 * jax.random.normal(ks[11], (64, H), jnp.float32),
        "c2": 0.01 * jax.random.normal(ks[12], (1, H), jnp.float32),
        "W3": 0.05 * jax.random.normal(ks[13], (H, P), jnp.float32),
        "c3": 0.01 * jax.random.normal(ks[14], (1, P), jnp.float32),
    }

    out = jax.jit(fgn_forward)(x, params)
    out = jax.block_until_ready(out)

    ref = fgn_reference(x, params)
    assert out.shape == (B, N), out.shape
    assert bool(jnp.all(jnp.isfinite(out)))
    assert bool(jnp.allclose(out, ref, rtol=1e-2, atol=1e-2)), (out, ref)

    print("KERNEL_OK")
</pallas_src>

<mosaic_0001>
module attributes {stable_mosaic.version = 11 : i64} {
  func.func @_fgn_kernel(%arg0: i32, %arg1: memref<64x1xf32, #tpu.memory_space<vmem>>, %arg2: memref<1x32xf32, #tpu.memory_space<vmem>>, %arg3: memref<2x34x64xf32, #tpu.memory_space<vmem>>, %arg4: memref<12x32xf32, #tpu.memory_space<vmem>>, %arg5: memref<2x64x34xf32, #tpu.memory_space<vmem>>, %arg6: memref<256x64xf32, #tpu.memory_space<vmem>>, %arg7: memref<64x32xf32, #tpu.memory_space<vmem>>, %arg8: memref<32x1xf32, #tpu.memory_space<vmem>>, %arg9: memref<3x64xf32, #tpu.memory_space<vmem>>, %arg10: memref<8x1xf32, #tpu.memory_space<vmem>>) attributes {dimension_semantics = [#tpu.dimension_semantics<arbitrary>], iteration_bounds = array<i64: 1>, scalar_prefetch = 0 : i64, scratch_operands = 0 : i64, tpu.core_type = #tpu.core_type<tc>, window_params = [{pipeline_mode = #tpu.pipeline_mode<synchronous>, transform_indices = @transform_0, window_bounds = array<i64: 64, 1>}, {pipeline_mode = #tpu.pipeline_mode<synchronous>, transform_indices = @transform_1, window_bounds = array<i64: 1, 32>}, {pipeline_mode = #tpu.pipeline_mode<synchronous>, transform_indices = @transform_2, window_bounds = array<i64: 2, 34, 64>}, {pipeline_mode = #tpu.pipeline_mode<synchronous>, transform_indices = @transform_3, window_bounds = array<i64: 12, 32>}, {pipeline_mode = #tpu.pipeline_mode<synchronous>, transform_indices = @transform_4, window_bounds = array<i64: 2, 64, 34>}, {pipeline_mode = #tpu.pipeline_mode<synchronous>, transform_indices = @transform_5, window_bounds = array<i64: 256, 64>}, {pipeline_mode = #tpu.pipeline_mode<synchronous>, transform_indices = @transform_6, window_bounds = array<i64: 64, 32>}, {pipeline_mode = #tpu.pipeline_mode<synchronous>, transform_indices = @transform_7, window_bounds = array<i64: 32, 1>}, {pipeline_mode = #tpu.pipeline_mode<synchronous>, transform_indices = @transform_8, window_bounds = array<i64: 3, 64>}, {pipeline_mode = #tpu.pipeline_mode<synchronous>, transform_indices = @transform_9, window_bounds = array<i64: 8, 1>}]} {
    %c0 = arith.constant 0 : index
    %c0_0 = arith.constant 0 : index
    %0 = vector.load %arg1[%c0, %c0_0] : memref<64x1xf32, #tpu.memory_space<vmem>>, vector<64x1xf32>
    %c0_1 = arith.constant 0 : index
    %c0_2 = arith.constant 0 : index
    %1 = vector.load %arg2[%c0_1, %c0_2] : memref<1x32xf32, #tpu.memory_space<vmem>>, vector<1x32xf32>
    %2 = vector.broadcast %0 : vector<64x1xf32> to vector<64x32xf32>
    %3 = vector.broadcast %1 : vector<1x32xf32> to vector<64x32xf32>
    %4 = arith.mulf %2, %3 : vector<64x32xf32>
    %c0_3 = arith.constant 0 : index
    %c0_4 = arith.constant 0 : index
    %c0_5 = arith.constant 0 : index
    %5 = vector.load %arg3[%c0_3, %c0_4, %c0_5] : memref<2x34x64xf32, #tpu.memory_space<vmem>>, vector<1x34x64xf32>
    %6 = vector.shape_cast %5 : vector<1x34x64xf32> to vector<34x64xf32>
    %cst = arith.constant dense<0.000000e+00> : vector<34x32xf32>
    %7 = tpu.matmul %6, %4, %cst {dimension_numbers = #tpu.dot_dimension_numbers<[1], [0], [0], [1], [0, 0, 1, 1], [], []>} : vector<34x64xf32>, vector<64x32xf32>, vector<34x32xf32> -> vector<34x32xf32>
    %c1 = arith.constant 1 : index
    %c0_6 = arith.constant 0 : index
    %c0_7 = arith.constant 0 : index
    %8 = vector.load %arg3[%c1, %c0_6, %c0_7] : memref<2x34x64xf32, #tpu.memory_space<vmem>>, vector<1x34x64xf32>
    %9 = vector.shape_cast %8 : vector<1x34x64xf32> to vector<34x64xf32>
    %cst_8 = arith.constant dense<0.000000e+00> : vector<34x32xf32>
    %10 = tpu.matmul %9, %4, %cst_8 {dimension_numbers = #tpu.dot_dimension_numbers<[1], [0], [0], [1], [0, 0, 1, 1], [], []>} : vector<34x64xf32>, vector<64x32xf32>, vector<34x32xf32> -> vector<34x32xf32>
    %c0_9 = arith.constant 0 : index
    %c0_10 = arith.constant 0 : index
    %11 = vector.load %arg4[%c0_9, %c0_10] : memref<12x32xf32, #tpu.memory_space<vmem>>, vector<1x32xf32>
    %c1_11 = arith.constant 1 : index
    %c0_12 = arith.constant 0 : index
    %12 = vector.load %arg4[%c1_11, %c0_12] : memref<12x32xf32, #tpu.memory_space<vmem>>, vector<1x32xf32>
    %c2 = arith.constant 2 : index
    %c0_13 = arith.constant 0 : index
    %13 = vector.load %arg4[%c2, %c0_13] : memref<12x32xf32, #tpu.memory_space<vmem>>, vector<1x32xf32>
    %c3 = arith.constant 3 : index
    %c0_14 = arith.constant 0 : index
    %14 = vector.load %arg4[%c3, %c0_14] : memref<12x32xf32, #tpu.memory_space<vmem>>, vector<1x32xf32>
    %c4 = arith.constant 4 : index
    %c0_15 = arith.constant 0 : index
    %15 = vector.load %arg4[%c4, %c0_15] : memref<12x32xf32, #tpu.memory_space<vmem>>, vector<1x32xf32>
    %c5 = arith.constant 5 : index
    %c0_16 = arith.constant 0 : index
    %16 = vector.load %arg4[%c5, %c0_16] : memref<12x32xf32, #tpu.memory_space<vmem>>, vector<1x32xf32>
    %c6 = arith.constant 6 : index
    %c0_17 = arith.constant 0 : index
    %17 = vector.load %arg4[%c6, %c0_17] : memref<12x32xf32, #tpu.memory_space<vmem>>, vector<1x32xf32>
    %c7 = arith.constant 7 : index
    %c0_18 = arith.constant 0 : index
    %18 = vector.load %arg4[%c7, %c0_18] : memref<12x32xf32, #tpu.memory_space<vmem>>, vector<1x32xf32>
    %c8 = arith.constant 8 : index
    %c0_19 = arith.constant 0 : index
    %19 = vector.load %arg4[%c8, %c0_19] : memref<12x32xf32, #tpu.memory_space<vmem>>, vector<1x32xf32>
    %c9 = arith.constant 9 : index
    %c0_20 = arith.constant 0 : index
    %20 = vector.load %arg4[%c9, %c0_20] : memref<12x32xf32, #tpu.memory_space<vmem>>, vector<1x32xf32>
    %c10 = arith.constant 10 : index
    %c0_21 = arith.constant 0 : index
    %21 = vector.load %arg4[%c10, %c0_21] : memref<12x32xf32, #tpu.memory_space<vmem>>, vector<1x32xf32>
    %c11 = arith.constant 11 : index
    %c0_22 = arith.constant 0 : index
    %22 = vector.load %arg4[%c11, %c0_22] : memref<12x32xf32, #tpu.memory_space<vmem>>, vector<1x32xf32>
    %23 = vector.broadcast %11 : vector<1x32xf32> to vector<34x32xf32>
    %24 = arith.mulf %7, %23 : vector<34x32xf32>
    %25 = vector.broadcast %12 : vector<1x32xf32> to vector<34x32xf32>
    %26 = arith.mulf %10, %25 : vector<34x32xf32>
    %27 = arith.subf %24, %26 : vector<34x32xf32>
    %28 = vector.broadcast %13 : vector<1x32xf32> to vector<34x32xf32>
    %29 = arith.addf %27, %28 : vector<34x32xf32>
    %cst_23 = arith.constant 0.000000e+00 : f32
    %30 = vector.broadcast %cst_23 : f32 to vector<34x32xf32>
    %31 = arith.maximumf %29, %30 : vector<34x32xf32>
    %32 = vector.broadcast %11 : vector<1x32xf32> to vector<34x32xf32>
    %33 = arith.mulf %10, %32 : vector<34x32xf32>
    %34 = vector.broadcast %12 : vector<1x32xf32> to vector<34x32xf32>
    %35 = arith.mulf %7, %34 : vector<34x32xf32>
    %36 = arith.addf %33, %35 : vector<34x32xf32>
    %37 = vector.broadcast %14 : vector<1x32xf32> to vector<34x32xf32>
    %38 = arith.addf %36, %37 : vector<34x32xf32>
    %cst_24 = arith.constant 0.000000e+00 : f32
    %39 = vector.broadcast %cst_24 : f32 to vector<34x32xf32>
    %40 = arith.maximumf %38, %39 : vector<34x32xf32>
    %cst_25 = arith.constant 0.00999999977 : f32
    %41 = vector.broadcast %cst_25 : f32 to vector<34x32xf32>
    %42 = arith.cmpf ogt, %31, %41 : vector<34x32xf32>
    %cst_26 = arith.constant 0.00999999977 : f32
    %43 = vector.broadcast %cst_26 : f32 to vector<34x32xf32>
    %44 = arith.subf %31, %43 : vector<34x32xf32>
    %cst_27 = arith.constant -0.00999999977 : f32
    %45 = vector.broadcast %cst_27 : f32 to vector<34x32xf32>
    %46 = arith.cmpf olt, %31, %45 : vector<34x32xf32>
    %cst_28 = arith.constant 0.00999999977 : f32
    %47 = vector.broadcast %cst_28 : f32 to vector<34x32xf32>
    %48 = arith.addf %31, %47 : vector<34x32xf32>
    %cst_29 = arith.constant 0.000000e+00 : f32
    %49 = vector.broadcast %cst_29 : f32 to vector<34x32xf32>
    %50 = arith.select %46, %48, %49 : vector<34x32xi1>, vector<34x32xf32>
    %51 = arith.select %42, %44, %50 : vector<34x32xi1>, vector<34x32xf32>
    %cst_30 = arith.constant 0.00999999977 : f32
    %52 = vector.broadcast %cst_30 : f32 to vector<34x32xf32>
    %53 = arith.cmpf ogt, %40, %52 : vector<34x32xf32>
    %cst_31 = arith.constant 0.00999999977 : f32
    %54 = vector.broadcast %cst_31 : f32 to vector<34x32xf32>
    %55 = arith.subf %40, %54 : vector<34x32xf32>
    %cst_32 = arith.constant -0.00999999977 : f32
    %56 = vector.broadcast %cst_32 : f32 to vector<34x32xf32>
    %57 = arith.cmpf olt, %40, %56 : vector<34x32xf32>
    %cst_33 = arith.constant 0.00999999977 : f32
    %58 = vector.broadcast %cst_33 : f32 to vector<34x32xf32>
    %59 = arith.addf %40, %58 : vector<34x32xf32>
    %cst_34 = arith.constant 0.000000e+00 : f32
    %60 = vector.broadcast %cst_34 : f32 to vector<34x32xf32>
    %61 = arith.select %57, %59, %60 : vector<34x32xi1>, vector<34x32xf32>
    %62 = arith.select %53, %55, %61 : vector<34x32xi1>, vector<34x32xf32>
    %63 = vector.broadcast %15 : vector<1x32xf32> to vector<34x32xf32>
    %64 = arith.mulf %31, %63 : vector<34x32xf32>
    %65 = vector.broadcast %16 : vector<1x32xf32> to vector<34x32xf32>
    %66 = arith.mulf %40, %65 : vector<34x32xf32>
    %67 = arith.subf %64, %66 : vector<34x32xf32>
    %68 = vector.broadcast %17 : vector<1x32xf32> to vector<34x32xf32>
    %69 = arith.addf %67, %68 : vector<34x32xf32>
    %cst_35 = arith.constant 0.000000e+00 : f32
    %70 = vector.broadcast %cst_35 : f32 to vector<34x32xf32>
    %71 = arith.maximumf %69, %70 : vector<34x32xf32>
    %72 = vector.broadcast %15 : vector<1x32xf32> to vector<34x32xf32>
    %73 = arith.mulf %40, %72 : vector<34x32xf32>
    %74 = vector.broadcast %16 : vector<1x32xf32> to vector<34x32xf32>
    %75 = arith.mulf %31, %74 : vector<34x32xf32>
    %76 = arith.addf %73, %75 : vector<34x32xf32>
    %77 = vector.broadcast %18 : vector<1x32xf32> to vector<34x32xf32>
    %78 = arith.addf %76, %77 : vector<34x32xf32>
    %cst_36 = arith.constant 0.000000e+00 : f32
    %79 = vector.broadcast %cst_36 : f32 to vector<34x32xf32>
    %80 = arith.maximumf %78, %79 : vector<34x32xf32>
    %cst_37 = arith.constant 0.00999999977 : f32
    %81 = vector.broadcast %cst_37 : f32 to vector<34x32xf32>
    %82 = arith.cmpf ogt, %71, %81 : vector<34x32xf32>
    %cst_38 = arith.constant 0.00999999977 : f32
    %83 = vector.broadcast %cst_38 : f32 to vector<34x32xf32>
    %84 = arith.subf %71, %83 : vector<34x32xf32>
    %cst_39 = arith.constant -0.00999999977 : f32
    %85 = vector.broadcast %cst_39 : f32 to vector<34x32xf32>
    %86 = arith.cmpf olt, %71, %85 : vector<34x32xf32>
    %cst_40 = arith.constant 0.00999999977 : f32
    %87 = vector.broadcast %cst_40 : f32 to vector<34x32xf32>
    %88 = arith.addf %71, %87 : vector<34x32xf32>
    %cst_41 = arith.constant 0.000000e+00 : f32
    %89 = vector.broadcast %cst_41 : f32 to vector<34x32xf32>
    %90 = arith.select %86, %88, %89 : vector<34x32xi1>, vector<34x32xf32>
    %91 = arith.select %82, %84, %90 : vector<34x32xi1>, vector<34x32xf32>
    %92 = arith.addf %91, %51 : vector<34x32xf32>
    %cst_42 = arith.constant 0.00999999977 : f32
    %93 = vector.broadcast %cst_42 : f32 to vector<34x32xf32>
    %94 = arith.cmpf ogt, %80, %93 : vector<34x32xf32>
    %cst_43 = arith.constant 0.00999999977 : f32
    %95 = vector.broadcast %cst_43 : f32 to vector<34x32xf32>
    %96 = arith.subf %80, %95 : vector<34x32xf32>
    %cst_44 = arith.constant -0.00999999977 : f32
    %97 = vector.broadcast %cst_44 : f32 to vector<34x32xf32>
    %98 = arith.cmpf olt, %80, %97 : vector<34x32xf32>
    %cst_45 = arith.constant 0.00999999977 : f32
    %99 = vector.broadcast %cst_45 : f32 to vector<34x32xf32>
    %100 = arith.addf %80, %99 : vector<34x32xf32>
    %cst_46 = arith.constant 0.000000e+00 : f32
    %101 = vector.broadcast %cst_46 : f32 to vector<34x32xf32>
    %102 = arith.select %98, %100, %101 : vector<34x32xi1>, vector<34x32xf32>
    %103 = arith.select %94, %96, %102 : vector<34x32xi1>, vector<34x32xf32>
    %104 = arith.addf %103, %62 : vector<34x32xf32>
    %105 = vector.broadcast %19 : vector<1x32xf32> to vector<34x32xf32>
    %106 = arith.mulf %71, %105 : vector<34x32xf32>
    %107 = vector.broadcast %20 : vector<1x32xf32> to vector<34x32xf32>
    %108 = arith.mulf %80, %107 : vector<34x32xf32>
    %109 = arith.subf %106, %108 : vector<34x32xf32>
    %110 = vector.broadcast %21 : vector<1x32xf32> to vector<34x32xf32>
    %111 = arith.addf %109, %110 : vector<34x32xf32>
    %cst_47 = arith.constant 0.000000e+00 : f32
    %112 = vector.broadcast %cst_47 : f32 to vector<34x32xf32>
    %113 = arith.maximumf %111, %112 : vector<34x32xf32>
    %114 = vector.broadcast %19 : vector<1x32xf32> to vector<34x32xf32>
    %115 = arith.mulf %80, %114 : vector<34x32xf32>
    %116 = vector.broadcast %20 : vector<1x32xf32> to vector<34x32xf32>
    %117 = arith.mulf %71, %116 : vector<34x32xf32>
    %118 = arith.addf %115, %117 : vector<34x32xf32>
    %119 = vector.broadcast %22 : vector<1x32xf32> to vector<34x32xf32>
    %120 = arith.addf %118, %119 : vector<34x32xf32>
    %cst_48 = arith.constant 0.000000e+00 : f32
    %121 = vector.broadcast %cst_48 : f32 to vector<34x32xf32>
    %122 = arith.maximumf %120, %121 : vector<34x32xf32>
    %cst_49 = arith.constant 0.00999999977 : f32
    %123 = vector.broadcast %cst_49 : f32 to vector<34x32xf32>
    %124 = arith.cmpf ogt, %113, %123 : vector<34x32xf32>
    %cst_50 = arith.constant 0.00999999977 : f32
    %125 = vector.broadcast %cst_50 : f32 to vector<34x32xf32>
    %126 = arith.subf %113, %125 : vector<34x32xf32>
    %cst_51 = arith.constant -0.00999999977 : f32
    %127 = vector.broadcast %cst_51 : f32 to vector<34x32xf32>
    %128 = arith.cmpf olt, %113, %127 : vector<34x32xf32>
    %cst_52 = arith.constant 0.00999999977 : f32
    %129 = vector.broadcast %cst_52 : f32 to vector<34x32xf32>
    %130 = arith.addf %113, %129 : vector<34x32xf32>
    %cst_53 = arith.constant 0.000000e+00 : f32
    %131 = vector.broadcast %cst_53 : f32 to vector<34x32xf32>
    %132 = arith.select %128, %130, %131 : vector<34x32xi1>, vector<34x32xf32>
    %133 = arith.select %124, %126, %132 : vector<34x32xi1>, vector<34x32xf32>
    %134 = arith.addf %133, %92 : vector<34x32xf32>
    %135 = arith.addf %134, %7 : vector<34x32xf32>
    %cst_54 = arith.constant 0.00999999977 : f32
    %136 = vector.broadcast %cst_54 : f32 to vector<34x32xf32>
    %137 = arith.cmpf ogt, %122, %136 : vector<34x32xf32>
    %cst_55 = arith.constant 0.00999999977 : f32
    %138 = vector.broadcast %cst_55 : f32 to vector<34x32xf32>
    %139 = arith.subf %122, %138 : vector<34x32xf32>
    %cst_56 = arith.constant -0.00999999977 : f32
    %140 = vector.broadcast %cst_56 : f32 to vector<34x32xf32>
    %141 = arith.cmpf olt, %122, %140 : vector<34x32xf32>
    %cst_57 = arith.constant 0.00999999977 : f32
    %142 = vector.broadcast %cst_57 : f32 to vector<34x32xf32>
    %143 = arith.addf %122, %142 : vector<34x32xf32>
    %cst_58 = arith.constant 0.000000e+00 : f32
    %144 = vector.broadcast %cst_58 : f32 to vector<34x32xf32>
    %145 = arith.select %141, %143, %144 : vector<34x32xi1>, vector<34x32xf32>
    %146 = arith.select %137, %139, %145 : vector<34x32xi1>, vector<34x32xf32>
    %147 = arith.addf %146, %104 : vector<34x32xf32>
    %148 = arith.addf %147, %10 : vector<34x32xf32>
    %c0_59 = arith.constant 0 : index
    %c0_60 = arith.constant 0 : index
    %c0_61 = arith.constant 0 : index
    %149 = vector.load %arg5[%c0_59, %c0_60, %c0_61] : memref<2x64x34xf32, #tpu.memory_space<vmem>>, vector<1x64x34xf32>
    %150 = vector.shape_cast %149 : vector<1x64x34xf32> to vector<64x34xf32>
    %cst_62 = arith.constant dense<0.000000e+00> : vector<64x32xf32>
    %151 = tpu.matmul %150, %135, %cst_62 {dimension_numbers = #tpu.dot_dimension_numbers<[1], [0], [0], [1], [0, 0, 1, 1], [], []>} : vector<64x34xf32>, vector<34x32xf32>, vector<64x32xf32> -> vector<64x32xf32>
    %c1_63 = arith.constant 1 : index
    %c0_64 = arith.constant 0 : index
    %c0_65 = arith.constant 0 : index
    %152 = vector.load %arg5[%c1_63, %c0_64, %c0_65] : memref<2x64x34xf32, #tpu.memory_space<vmem>>, vector<1x64x34xf32>
    %153 = vector.shape_cast %152 : vector<1x64x34xf32> to vector<64x34xf32>
    %cst_66 = arith.constant dense<0.000000e+00> : vector<64x32xf32>
    %154 = tpu.matmul %153, %148, %cst_66 {dimension_numbers = #tpu.dot_dimension_numbers<[1], [0], [0], [1], [0, 0, 1, 1], [], []>} : vector<64x34xf32>, vector<34x32xf32>, vector<64x32xf32> -> vector<64x32xf32>
    %155 = arith.addf %151, %154 : vector<64x32xf32>
    %156 = vector.extract_strided_slice %155 {offsets = [0, 0], sizes = [8, 32], strides = [1, 1]} : vector<64x32xf32> to vector<8x32xf32>
    %c0_67 = arith.constant 0 : index
    %c0_68 = arith.constant 0 : index
    %157 = vector.load %arg6[%c0_67, %c0_68] : memref<256x64xf32, #tpu.memory_space<vmem>>, vector<32x64xf32>
    %cst_69 = arith.constant dense<0.000000e+00> : vector<8x64xf32>
    %158 = tpu.matmul %156, %157, %cst_69 {dimension_numbers = #tpu.dot_dimension_numbers<[1], [0], [0], [1], [0, 0, 1, 1], [], []>} : vector<8x32xf32>, vector<32x64xf32>, vector<8x64xf32> -> vector<8x64xf32>
    %159 = vector.extract_strided_slice %155 {offsets = [8, 0], sizes = [8, 32], strides = [1, 1]} : vector<64x32xf32> to vector<8x32xf32>
    %c32 = arith.constant 32 : index
    %c0_70 = arith.constant 0 : index
    %160 = vector.load %arg6[%c32, %c0_70] : memref<256x64xf32, #tpu.memory_space<vmem>>, vector<32x64xf32>
    %cst_71 = arith.constant dense<0.000000e+00> : vector<8x64xf32>
    %161 = tpu.matmul %159, %160, %cst_71 {dimension_numbers = #tpu.dot_dimension_numbers<[1], [0], [0], [1], [0, 0, 1, 1], [], []>} : vector<8x32xf32>, vector<32x64xf32>, vector<8x64xf32> -> vector<8x64xf32>
    %162 = arith.addf %158, %161 : vector<8x64xf32>
    %163 = vector.extract_strided_slice %155 {offsets = [16, 0], sizes = [8, 32], strides = [1, 1]} : vector<64x32xf32> to vector<8x32xf32>
    %c64 = arith.constant 64 : index
    %c0_72 = arith.constant 0 : index
    %164 = vector.load %arg6[%c64, %c0_72] : memref<256x64xf32, #tpu.memory_space<vmem>>, vector<32x64xf32>
    %cst_73 = arith.constant dense<0.000000e+00> : vector<8x64xf32>
    %165 = tpu.matmul %163, %164, %cst_73 {dimension_numbers = #tpu.dot_dimension_numbers<[1], [0], [0], [1], [0, 0, 1, 1], [], []>} : vector<8x32xf32>, vector<32x64xf32>, vector<8x64xf32> -> vector<8x64xf32>
    %166 = arith.addf %162, %165 : vector<8x64xf32>
    %167 = vector.extract_strided_slice %155 {offsets = [24, 0], sizes = [8, 32], strides = [1, 1]} : vector<64x32xf32> to vector<8x32xf32>
    %c96 = arith.constant 96 : index
    %c0_74 = arith.constant 0 : index
    %168 = vector.load %arg6[%c96, %c0_74] : memref<256x64xf32, #tpu.memory_space<vmem>>, vector<32x64xf32>
    %cst_75 = arith.constant dense<0.000000e+00> : vector<8x64xf32>
    %169 = tpu.matmul %167, %168, %cst_75 {dimension_numbers = #tpu.dot_dimension_numbers<[1], [0], [0], [1], [0, 0, 1, 1], [], []>} : vector<8x32xf32>, vector<32x64xf32>, vector<8x64xf32> -> vector<8x64xf32>
    %170 = arith.addf %166, %169 : vector<8x64xf32>
    %171 = vector.extract_strided_slice %155 {offsets = [32, 0], sizes = [8, 32], strides = [1, 1]} : vector<64x32xf32> to vector<8x32xf32>
    %c128 = arith.constant 128 : index
    %c0_76 = arith.constant 0 : index
    %172 = vector.load %arg6[%c128, %c0_76] : memref<256x64xf32, #tpu.memory_space<vmem>>, vector<32x64xf32>
    %cst_77 = arith.constant dense<0.000000e+00> : vector<8x64xf32>
    %173 = tpu.matmul %171, %172, %cst_77 {dimension_numbers = #tpu.dot_dimension_numbers<[1], [0], [0], [1], [0, 0, 1, 1], [], []>} : vector<8x32xf32>, vector<32x64xf32>, vector<8x64xf32> -> vector<8x64xf32>
    %174 = arith.addf %170, %173 : vector<8x64xf32>
    %175 = vector.extract_strided_slice %155 {offsets = [40, 0], sizes = [8, 32], strides = [1, 1]} : vector<64x32xf32> to vector<8x32xf32>
    %c160 = arith.constant 160 : index
    %c0_78 = arith.constant 0 : index
    %176 = vector.load %arg6[%c160, %c0_78] : memref<256x64xf32, #tpu.memory_space<vmem>>, vector<32x64xf32>
    %cst_79 = arith.constant dense<0.000000e+00> : vector<8x64xf32>
    %177 = tpu.matmul %175, %176, %cst_79 {dimension_numbers = #tpu.dot_dimension_numbers<[1], [0], [0], [1], [0, 0, 1, 1], [], []>} : vector<8x32xf32>, vector<32x64xf32>, vector<8x64xf32> -> vector<8x64xf32>
    %178 = arith.addf %174, %177 : vector<8x64xf32>
    %179 = vector.extract_strided_slice %155 {offsets = [48, 0], sizes = [8, 32], strides = [1, 1]} : vector<64x32xf32> to vector<8x32xf32>
    %c192 = arith.constant 192 : index
    %c0_80 = arith.constant 0 : index
    %180 = vector.load %arg6[%c192, %c0_80] : memref<256x64xf32, #tpu.memory_space<vmem>>, vector<32x64xf32>
    %cst_81 = arith.constant dense<0.000000e+00> : vector<8x64xf32>
    %181 = tpu.matmul %179, %180, %cst_81 {dimension_numbers = #tpu.dot_dimension_numbers<[1], [0], [0], [1], [0, 0, 1, 1], [], []>} : vector<8x32xf32>, vector<32x64xf32>, vector<8x64xf32> -> vector<8x64xf32>
    %182 = arith.addf %178, %181 : vector<8x64xf32>
    %183 = vector.extract_strided_slice %155 {offsets = [56, 0], sizes = [8, 32], strides = [1, 1]} : vector<64x32xf32> to vector<8x32xf32>
    %c224 = arith.constant 224 : index
    %c0_82 = arith.constant 0 : index
    %184 = vector.load %arg6[%c224, %c0_82] : memref<256x64xf32, #tpu.memory_space<vmem>>, vector<32x64xf32>
    %cst_83 = arith.constant dense<0.000000e+00> : vector<8x64xf32>
    %185 = tpu.matmul %183, %184, %cst_83 {dimension_numbers = #tpu.dot_dimension_numbers<[1], [0], [0], [1], [0, 0, 1, 1], [], []>} : vector<8x32xf32>, vector<32x64xf32>, vector<8x64xf32> -> vector<8x64xf32>
    %186 = arith.addf %182, %185 : vector<8x64xf32>
    %c0_84 = arith.constant 0 : index
    %c0_85 = arith.constant 0 : index
    %187 = vector.load %arg9[%c0_84, %c0_85] : memref<3x64xf32, #tpu.memory_space<vmem>>, vector<1x64xf32>
    %188 = vector.broadcast %187 : vector<1x64xf32> to vector<8x64xf32>
    %189 = arith.addf %186, %188 : vector<8x64xf32>
    %cst_86 = arith.constant 0.000000e+00 : f32
    %190 = vector.broadcast %cst_86 : f32 to vector<8x64xf32>
    %191 = arith.cmpf ogt, %189, %190 : vector<8x64xf32>
    %cst_87 = arith.constant 0.00999999977 : f32
    %192 = vector.broadcast %cst_87 : f32 to vector<8x64xf32>
    %193 = arith.mulf %192, %189 : vector<8x64xf32>
    %194 = arith.select %191, %189, %193 : vector<8x64xi1>, vector<8x64xf32>
    %c0_88 = arith.constant 0 : index
    %c0_89 = arith.constant 0 : index
    %195 = vector.load %arg7[%c0_88, %c0_89] : memref<64x32xf32, #tpu.memory_space<vmem>>, vector<64x32xf32>
    %cst_90 = arith.constant dense<0.000000e+00> : vector<8x32xf32>
    %196 = tpu.matmul %194, %195, %cst_90 {dimension_numbers = #tpu.dot_dimension_numbers<[1], [0], [0], [1], [0, 0, 1, 1], [], []>} : vector<8x64xf32>, vector<64x32xf32>, vector<8x32xf32> -> vector<8x32xf32>
    %c1_91 = arith.constant 1 : index
    %c0_92 = arith.constant 0 : index
    %197 = vector.load %arg9[%c1_91, %c0_92] : memref<3x64xf32, #tpu.memory_space<vmem>>, vector<1x32xf32>
    %198 = vector.broadcast %197 : vector<1x32xf32> to vector<8x32xf32>
    %199 = arith.addf %196, %198 : vector<8x32xf32>
    %cst_93 = arith.constant 0.000000e+00 : f32
    %200 = vector.broadcast %cst_93 : f32 to vector<8x32xf32>
    %201 = arith.cmpf ogt, %199, %200 : vector<8x32xf32>
    %cst_94 = arith.constant 0.00999999977 : f32
    %202 = vector.broadcast %cst_94 : f32 to vector<8x32xf32>
    %203 = arith.mulf %202, %199 : vector<8x32xf32>
    %204 = arith.select %201, %199, %203 : vector<8x32xi1>, vector<8x32xf32>
    %c0_95 = arith.constant 0 : index
    %c0_96 = arith.constant 0 : index
    %205 = vector.load %arg8[%c0_95, %c0_96] : memref<32x1xf32, #tpu.memory_space<vmem>>, vector<32x1xf32>
    %cst_97 = arith.constant dense<0.000000e+00> : vector<8x1xf32>
    %206 = tpu.matmul %204, %205, %cst_97 {dimension_numbers = #tpu.dot_dimension_numbers<[1], [0], [0], [1], [0, 0, 1, 1], [], []>} : vector<8x32xf32>, vector<32x1xf32>, vector<8x1xf32> -> vector<8x1xf32>
    %c2_98 = arith.constant 2 : index
    %c0_99 = arith.constant 0 : index
    %207 = vector.load %arg9[%c2_98, %c0_99] : memref<3x64xf32, #tpu.memory_space<vmem>>, vector<1x1xf32>
    %208 = vector.broadcast %207 : vector<1x1xf32> to vector<8x1xf32>
    %209 = arith.addf %206, %208 : vector<8x1xf32>
    %c0_100 = arith.constant 0 : index
    %c0_101 = arith.constant 0 : index
    %210 = vector.load %arg10[%c0_100, %c0_101] : memref<8x1xf32, #tpu.memory_space<vmem>>, vector<8x1xf32>
    tpu.vector_store %arg10[%c0_100, %c0_101], %209 {strides = array<i32>} : memref<8x1xf32, #tpu.memory_space<vmem>>, vector<8x1xf32>,
    return
  }
  func.func @transform_0(%arg0: i32) -> (i32, i32) {
    %c0_i32 = arith.constant 0 : i32
    %c0_i32_0 = arith.constant 0 : i32
    %c0_i32_1 = arith.constant 0 : i32
    return %c0_i32, %c0_i32_0 : i32, i32
  }
  func.func @transform_1(%arg0: i32) -> (i32, i32) {
    %c0_i32 = arith.constant 0 : i32
    %c0_i32_0 = arith.constant 0 : i32
    %c0_i32_1 = arith.constant 0 : i32
    return %c0_i32, %c0_i32_0 : i32, i32
  }
  func.func @transform_2(%arg0: i32) -> (i32, i32, i32) {
    %c0_i32 = arith.constant 0 : i32
    %c0_i32_0 = arith.constant 0 : i32
    %c0_i32_1 = arith.constant 0 : i32
    %c0_i32_2 = arith.constant 0 : i32
    return %c0_i32, %c0_i32_0, %c0_i32_1 : i32, i32, i32
  }
  func.func @transform_3(%arg0: i32) -> (i32, i32) {
    %c0_i32 = arith.constant 0 : i32
    %c0_i32_0 = arith.constant 0 : i32
    %c0_i32_1 = arith.constant 0 : i32
    return %c0_i32, %c0_i32_0 : i32, i32
  }
  func.func @transform_4(%arg0: i32) -> (i32, i32, i32) {
    %c0_i32 = arith.constant 0 : i32
    %c0_i32_0 = arith.constant 0 : i32
    %c0_i32_1 = arith.constant 0 : i32
    %c0_i32_2 = arith.constant 0 : i32
    return %c0_i32, %c0_i32_0, %c0_i32_1 : i32, i32, i32
  }
  func.func @transform_5(%arg0: i32) -> (i32, i32) {
    %c0_i32 = arith.constant 0 : i32
    %c0_i32_0 = arith.constant 0 : i32
    %c0_i32_1 = arith.constant 0 : i32
    return %c0_i32, %c0_i32_0 : i32, i32
  }
  func.func @transform_6(%arg0: i32) -> (i32, i32) {
    %c0_i32 = arith.constant 0 : i32
    %c0_i32_0 = arith.constant 0 : i32
    %c0_i32_1 = arith.constant 0 : i32
    return %c0_i32, %c0_i32_0 : i32, i32
  }
  func.func @transform_7(%arg0: i32) -> (i32, i32) {
    %c0_i32 = arith.constant 0 : i32
    %c0_i32_0 = arith.constant 0 : i32
    %c0_i32_1 = arith.constant 0 : i32
    return %c0_i32, %c0_i32_0 : i32, i32
  }
  func.func @transform_8(%arg0: i32) -> (i32, i32) {
    %c0_i32 = arith.constant 0 : i32
    %c0_i32_0 = arith.constant 0 : i32
    %c0_i32_1 = arith.constant 0 : i32
    return %c0_i32, %c0_i32_0 : i32, i32
  }
  func.func @transform_9(%arg0: i32) -> (i32, i32) {
    %c0_i32 = arith.constant 0 : i32
    %c0_i32_0 = arith.constant 0 : i32
    %c0_i32_1 = arith.constant 0 : i32
    return %c0_i32, %c0_i32_0 : i32, i32
  }
}

</mosaic_0001>

<llo_original>
// kernel: fgn_forward.1
$region0: #{fgn_forward.1}
  #allocation0 [shape = 'u32[]', space=smem, size = 0x4, offset = 0x4, fixed_abs, tag = 'smem constant byte address 0x4 - core index']
  #allocation1 [shape = 'u32[144,128]{1,0:T(1,128)}', space=vmem, size = 0x12000, scoped, tag = 'internal scratch']
  %s0 = inlined_call_operand.vmem [shape: f32[64,1], index: 0, kind: input, shape index: {}]
  %s1 = inlined_call_operand.vmem [shape: f32[1,32], index: 1, kind: input, shape index: {}]
  %s2 = inlined_call_operand.vmem [shape: f32[2,34,64], index: 2, kind: input, shape index: {}]
  %s3 = inlined_call_operand.vmem [shape: f32[12,32], index: 3, kind: input, shape index: {}]
  %s4 = inlined_call_operand.vmem [shape: f32[2,64,34], index: 4, kind: input, shape index: {}]
  %s5 = inlined_call_operand.vmem [shape: f32[256,64], index: 5, kind: input, shape index: {}]
  %s6 = inlined_call_operand.vmem [shape: f32[64,32], index: 6, kind: input, shape index: {}]
  %s7 = inlined_call_operand.vmem [shape: f32[32,1], index: 7, kind: input, shape index: {}]
  %s8 = inlined_call_operand.vmem [shape: f32[3,64], index: 8, kind: input, shape index: {}]
  %s9 = inlined_call_operand.vmem [shape: f32[8,1], index: 9, kind: output, shape index: {}]
  %s10 = sld [smem:[#allocation0]]
  $region46: #{fgn_forward.1} parent=0
    _
  %s12 = ssub.s32 1, %s10
  %s13 = scalar_select 0, %s12, %s10
  // Predicated region
  $region2: #{fgn_forward.1} parent=0 // pred_check
    _
  $region3: #{fgn_forward.1} parent=0 // pred_check_branch
    %15 = sbr.rel (0) target = $region5
  $region4: #{fgn_forward.1} parent=0 // pred_region
    _
  $region5: #{fgn_forward.1} parent=0 // pred_fallthru
    _
  // Predicated region
  $region6: #{fgn_forward.1} parent=0 // pred_check
    _
  $region7: #{fgn_forward.1} parent=0 // pred_check_branch
    %17 = sbr.rel (0) target = $region9
  $region8: #{fgn_forward.1} parent=0 // pred_region
    _
  $region9: #{fgn_forward.1} parent=0 // pred_fallthru
    _
  // Predicated region
  $region10: #{fgn_forward.1} parent=0 // pred_check
    _
  $region11: #{fgn_forward.1} parent=0 // pred_check_branch
    %19 = sbr.rel (0) target = $region13
  $region12: #{fgn_forward.1} parent=0 // pred_region
    _
  $region13: #{fgn_forward.1} parent=0 // pred_fallthru
    _
  // Predicated region
  $region14: #{fgn_forward.1} parent=0 // pred_check
    _
  $region15: #{fgn_forward.1} parent=0 // pred_check_branch
    %21 = sbr.rel (0) target = $region17
  $region16: #{fgn_forward.1} parent=0 // pred_region
    _
  $region17: #{fgn_forward.1} parent=0 // pred_fallthru
    _
  // Predicated region
  $region18: #{fgn_forward.1} parent=0 // pred_check
    _
  $region19: #{fgn_forward.1} parent=0 // pred_check_branch
    %23 = sbr.rel (0) target = $region21
  $region20: #{fgn_forward.1} parent=0 // pred_region
    _
  $region21: #{fgn_forward.1} parent=0 // pred_fallthru
    _
  // Predicated region
  $region22: #{fgn_forward.1} parent=0 // pred_check
    _
  $region23: #{fgn_forward.1} parent=0 // pred_check_branch
    %25 = sbr.rel (0) target = $region25
  $region24: #{fgn_forward.1} parent=0 // pred_region
    _
  $region25: #{fgn_forward.1} parent=0 // pred_fallthru
    _
  // Predicated region
  $region26: #{fgn_forward.1} parent=0 // pred_check
    _
  $region27: #{fgn_forward.1} parent=0 // pred_check_branch
    %27 = sbr.rel (0) target = $region29
  $region28: #{fgn_forward.1} parent=0 // pred_region
    _
  $region29: #{fgn_forward.1} parent=0 // pred_fallthru
    _
  // Predicated region
  $region30: #{fgn_forward.1} parent=0 // pred_check
    _
  $region31: #{fgn_forward.1} parent=0 // pred_check_branch
    %29 = sbr.rel (0) target = $region33
  $region32: #{fgn_forward.1} parent=0 // pred_region
    _
  $region33: #{fgn_forward.1} parent=0 // pred_fallthru
    _
  // Predicated region
  $region34: #{fgn_forward.1} parent=0 // pred_check
    _
  $region35: #{fgn_forward.1} parent=0 // pred_check_branch
    %31 = sbr.rel (0) target = $region37
  $region36: #{fgn_forward.1} parent=0 // pred_region
    _
  $region37: #{fgn_forward.1} parent=0 // pred_fallthru
    _
  %v32 = vld [vmem:[%s0] sm:$0xff]
  %v33 = vld [vmem:[%s0 + $0x8] sm:$0xff]
  %v34 = vld [vmem:[%s0 + $0x10] sm:$0xff]
  %v35 = vld [vmem:[%s0 + $0x18] sm:$0xff]
  %v36 = vld [vmem:[%s0 + $0x20] sm:$0xff]
  %v37 = vld [vmem:[%s0 + $0x28] sm:$0xff]
  %v38 = vld [vmem:[%s0 + $0x30] sm:$0xff]
  %v39 = vld [vmem:[%s0 + $0x38] sm:$0xff]
  %v40 = vld [vmem:[%s1] sm:$0x1]
  %42 = vset.pattern.permute.xlu0 0
  %43 = vperm.xlu0 %42, %v32
  %v44 = vpop.permute.xlu0 %43
  %47 = vset.pattern.permute.xlu0 0
  %48 = vperm.xlu0 %47, %v33
  %v49 = vpop.permute.xlu0 %48
  %52 = vset.pattern.permute.xlu0 0
  %53 = vperm.xlu0 %52, %v34
  %v54 = vpop.permute.xlu0 %53
  %57 = vset.pattern.permute.xlu0 0
  %58 = vperm.xlu0 %57, %v35
  %v59 = vpop.permute.xlu0 %58
  %62 = vset.pattern.permute.xlu0 0
  %63 = vperm.xlu0 %62, %v36
  %v64 = vpop.permute.xlu0 %63
  %67 = vset.pattern.permute.xlu0 0
  %68 = vperm.xlu0 %67, %v37
  %v69 = vpop.permute.xlu0 %68
  %72 = vset.pattern.permute.xlu0 0
  %73 = vperm.xlu0 %72, %v38
  %v74 = vpop.permute.xlu0 %73
  %77 = vset.pattern.permute.xlu0 0
  %78 = vperm.xlu0 %77, %v39
  %v79 = vpop.permute.xlu0 %78
  %v82 = vlaneseq
  %v83 = vshrl.u32 %v82, 7
  %v84 = vsub.s32 0, %v83
  %v85 = vrot.slane %v40, %v84
  %v87 = vmul.f32 %v44, %v85
  %v88 = vmul.f32 %v49, %v85
  %v89 = vmul.f32 %v54, %v85
  %v90 = vmul.f32 %v59, %v85
  %v91 = vmul.f32 %v64, %v85
  %v92 = vmul.f32 %v69, %v85
  %v93 = vmul.f32 %v74, %v85
  %v94 = vmul.f32 %v79, %v85
  %v95 = vld [vmem:[%s2] sm:$0xff]
  %v96 = vld [vmem:[%s2 + $0x8] sm:$0xff]
  %v97 = vld [vmem:[%s2 + $0x10] sm:$0xff]
  %v98 = vld [vmem:[%s2 + $0x18] sm:$0xff]
  %v99 = vld [vmem:[%s2 + $0x20] sm:$0x3]
  %vm100 = vcmask 523264
  %v102 = vsel %vm100, %v95, 0
  %v105 = vsel %vm100, %v96, 0
  %v108 = vsel %vm100, %v97, 0
  %v111 = vsel %vm100, %v98, 0
  %v114 = vsel %vm100, %v99, 0
  %116 = vmatprep.subr.mxu0 0.0
  %117 = vmatpush1.msra.mxu0 0.0
  %118 = vmatprep.subr.mxu0 0.0
  %119 = vmatpush1.msra.mxu0 0.0
  %120 = vmatprep.subr.mxu0 0.0
  %121 = vmatpush1.msra.mxu0 0.0
  %122 = vmatprep.subr.mxu0 0.0
  %123 = vmatpush1.msra.mxu0 0.0
  %124 = vmatprep.subr.mxu0 0.0
  %125 = vmatpush1.msra.mxu0 0.0
  %126 = vmatprep.subr.mxu0 0.0
  %127 = vmatpush1.msra.mxu0 0.0
  %128 = vmatprep.subr.mxu0 0.0
  %129 = vmatpush1.msra.mxu0 0.0
  %130 = vmatprep.subr.mxu0 0.0
  %131 = vmatpush1.msra.mxu0 0.0
  %132 = vmatprep.subr.mxu0 0.0
  %133 = vmatpush1.msra.mxu0 %v94
  %134 = vmatprep.subr.mxu0 0.0
  %135 = vmatpush1.msra.mxu0 %v93
  %136 = vmatprep.subr.mxu0 0.0
  %137 = vmatpush1.msra.mxu0 %v92
  %138 = vmatprep.subr.mxu0 0.0
  %139 = vmatpush1.msra.mxu0 %v91
  %140 = vmatprep.subr.mxu0 0.0
  %141 = vmatpush1.msra.mxu0 %v90
  %142 = vmatprep.subr.mxu0 0.0
  %143 = vmatpush1.msra.mxu0 %v89
  %144 = vmatprep.subr.mxu0 0.0
  %145 = vmatpush1.msra.mxu0 %v88
  %146 = vmatprep.subr.mxu0 0.0
  %147 = vmatpush1.msra.mxu0 %v87
  %148 = vmatprep.subr.mxu0 0.0
  %149 = vmatpush2.msra.mxu0 0.0
  %150 = vmatprep.subr.mxu0 0.0
  %151 = vmatpush2.msra.mxu0 0.0
  %152 = vmatprep.subr.mxu0 0.0
  %153 = vmatpush2.msra.mxu0 0.0
  %154 = vmatprep.subr.mxu0 0.0
  %155 = vmatpush2.msra.mxu0 0.0
  %156 = vmatprep.subr.mxu0 0.0
  %157 = vmatpush2.msra.mxu0 0.0
  %158 = vmatprep.subr.mxu0 0.0
  %159 = vmatpush2.msra.mxu0 0.0
  %160 = vmatprep.subr.mxu0 0.0
  %161 = vmatpush2.msra.mxu0 0.0
  %162 = vmatprep.subr.mxu0 0.0
  %163 = vmatpush2.msra.mxu0 0.0
  %164 = vmatprep.subr.mxu0 0.0
  %165 = vmatpush2.msra.mxu0 0.0
  %166 = vmatprep.subr.mxu0 0.0
  %167 = vmatpush2.msra.mxu0 0.0
  %168 = vmatprep.subr.mxu0 0.0
  %169 = vmatpush2.msra.mxu0 0.0
  %170 = vmatprep.subr.mxu0 0.0
  %171 = vmatpush2.msra.mxu0 0.0
  %172 = vmatprep.subr.mxu0 0.0
  %173 = vmatpush2.msra.mxu0 0.0
  %174 = vmatprep.subr.mxu0 0.0
  %175 = vmatpush2.msra.mxu0 0.0
  %176 = vmatprep.subr.mxu0 0.0
  %177 = vmatpush2.msra.mxu0 0.0
  %178 = vmatprep.subr.mxu0 0.0
  %179 = vmatpush2.msra.mxu0 0.0
  %180 = vmatprep.mubr.f32.mxu0 0.0
  %181 = vmatmul.mubr.f32.gmra.mxu0 %v102
  %v182 = vpop.f32.mrf.mxu0
  %v183 = vadd.f32 0.0, %v182
  %v184 = vpop.f32.mrf.mxu0
  %185 = vmatprep.mubr.f32.mxu0 0.0
  %186 = vmatmul.mubr.f32.gmra.mxu0 %v105
  %v187 = vpop.f32.mrf.mxu0
  %v188 = vadd.f32 0.0, %v187
  %v189 = vpop.f32.mrf.mxu0
  %190 = vmatprep.mubr.f32.mxu0 0.0
  %191 = vmatmul.mubr.f32.gmra.mxu0 %v108
  %v192 = vpop.f32.mrf.mxu0
  %v193 = vadd.f32 0.0, %v192
  %v194 = vpop.f32.mrf.mxu0
  %195 = vmatprep.mubr.f32.mxu0 0.0
  %196 = vmatmul.mubr.f32.gmra.mxu0 %v111
  %v197 = vpop.f32.mrf.mxu0
  %v198 = vadd.f32 0.0, %v197
  %v199 = vpop.f32.mrf.mxu0
  %200 = vmatprep.mubr.f32.mxu0 0.0
  %201 = vmatmul.mubr.f32.gmra.mxu0 %v114
  %v202 = vpop.f32.mrf.mxu0
  %v203 = vadd.f32 0.0, %v202
  %v204 = vpop.f32.mrf.mxu0
  %205 = vdwg.mxu0
  %s206 = scalar_lea.vmem %s2, 40
  %v207 = vld [vmem:[%s206] sm:$0xff]
  %v208 = vld [vmem:[%s206 + $0x8] sm:$0xff]
  %v209 = vld [vmem:[%s206 + $0x10] sm:$0xff]
  %v210 = vld [vmem:[%s206 + $0x18] sm:$0xff]
  %v211 = vld [vmem:[%s206 + $0x20] sm:$0x3]
  %v213 = vsel %vm100, %v207, 0
  %v216 = vsel %vm100, %v208, 0
  %v219 = vsel %vm100, %v209, 0
  %v222 = vsel %vm100, %v210, 0
  %v225 = vsel %vm100, %v211, 0
  %227 = vmatprep.subr.mxu0 0.0
  %228 = vmatpush1.msra.mxu0 0.0
  %229 = vmatprep.subr.mxu0 0.0
  %230 = vmatpush1.msra.mxu0 0.0
  %231 = vmatprep.subr.mxu0 0.0
  %232 = vmatpush1.msra.mxu0 0.0
  %233 = vmatprep.subr.mxu0 0.0
  %234 = vmatpush1.msra.mxu0 0.0
  %235 = vmatprep.subr.mxu0 0.0
  %236 = vmatpush1.msra.mxu0 0.0
  %237 = vmatprep.subr.mxu0 0.0
  %238 = vmatpush1.msra.mxu0 0.0
  %239 = vmatprep.subr.mxu0 0.0
  %240 = vmatpush1.msra.mxu0 0.0
  %241 = vmatprep.subr.mxu0 0.0
  %242 = vmatpush1.msra.mxu0 0.0
  %243 = vmatprep.subr.mxu0 0.0
  %244 = vmatpush1.msra.mxu0 %v94
  %245 = vmatprep.subr.mxu0 0.0
  %246 = vmatpush1.msra.mxu0 %v93
  %247 = vmatprep.subr.mxu0 0.0
  %248 = vmatpush1.msra.mxu0 %v92
  %249 = vmatprep.subr.mxu0 0.0
  %250 = vmatpush1.msra.mxu0 %v91
  %251 = vmatprep.subr.mxu0 0.0
  %252 = vmatpush1.msra.mxu0 %v90
  %253 = vmatprep.subr.mxu0 0.0
  %254 = vmatpush1.msra.mxu0 %v89
  %255 = vmatprep.subr.mxu0 0.0
  %256 = vmatpush1.msra.mxu0 %v88
  %257 = vmatprep.subr.mxu0 0.0
  %258 = vmatpush1.msra.mxu0 %v87
  %259 = vmatprep.subr.mxu0 0.0
  %260 = vmatpush2.msra.mxu0 0.0
  %261 = vmatprep.subr.mxu0 0.0
  %262 = vmatpush2.msra.mxu0 0.0
  %263 = vmatprep.subr.mxu0 0.0
  %264 = vmatpush2.msra.mxu0 0.0
  %265 = vmatprep.subr.mxu0 0.0
  %266 = vmatpush2.msra.mxu0 0.0
  %267 = vmatprep.subr.mxu0 0.0
  %268 = vmatpush2.msra.mxu0 0.0
  %269 = vmatprep.subr.mxu0 0.0
  %270 = vmatpush2.msra.mxu0 0.0
  %271 = vmatprep.subr.mxu0 0.0
  %272 = vmatpush2.msra.mxu0 0.0
  %273 = vmatprep.subr.mxu0 0.0
  %274 = vmatpush2.msra.mxu0 0.0
  %275 = vmatprep.subr.mxu0 0.0
  %276 = vmatpush2.msra.mxu0 0.0
  %277 = vmatprep.subr.mxu0 0.0
  %278 = vmatpush2.msra.mxu0 0.0
  %279 = vmatprep.subr.mxu0 0.0
  %280 = vmatpush2.msra.mxu0 0.0
  %281 = vmatprep.subr.mxu0 0.0
  %282 = vmatpush2.msra.mxu0 0.0
  %283 = vmatprep.subr.mxu0 0.0
  %284 = vmatpush2.msra.mxu0 0.0
  %285 = vmatprep.subr.mxu0 0.0
  %286 = vmatpush2.msra.mxu0 0.0
  %287 = vmatprep.subr.mxu0 0.0
  %288 = vmatpush2.msra.mxu0 0.0
  %289 = vmatprep.subr.mxu0 0.0
  %290 = vmatpush2.msra.mxu0 0.0
  %291 = vmatprep.mubr.f32.mxu0 0.0
  %292 = vmatmul.mubr.f32.gmra.mxu0 %v213
  %v293 = vpop.f32.mrf.mxu0
  %v294 = vadd.f32 0.0, %v293
  %v295 = vpop.f32.mrf.mxu0
  %296 = vmatprep.mubr.f32.mxu0 0.0
  %297 = vmatmul.mubr.f32.gmra.mxu0 %v216
  %v298 = vpop.f32.mrf.mxu0
  %v299 = vadd.f32 0.0, %v298
  %v300 = vpop.f32.mrf.mxu0
  %301 = vmatprep.mubr.f32.mxu0 0.0
  %302 = vmatmul.mubr.f32.gmra.mxu0 %v219
  %v303 = vpop.f32.mrf.mxu0
  %v304 = vadd.f32 0.0, %v303
  %v305 = vpop.f32.mrf.mxu0
  %306 = vmatprep.mubr.f32.mxu0 0.0
  %307 = vmatmul.mubr.f32.gmra.mxu0 %v222
  %v308 = vpop.f32.mrf.mxu0
  %v309 = vadd.f32 0.0, %v308
  %v310 = vpop.f32.mrf.mxu0
  %311 = vmatprep.mubr.f32.mxu0 0.0
  %312 = vmatmul.mubr.f32.gmra.mxu0 %v225
  %v313 = vpop.f32.mrf.mxu0
  %v314 = vadd.f32 0.0, %v313
  %v315 = vpop.f32.mrf.mxu0
  %316 = vdwg.mxu0
  %v317 = vld [vmem:[%s3] sm:$0x1]
  %v318 = vld [vmem:[%s3 + $0x1] sm:$0x1]
  %v319 = vld [vmem:[%s3 + $0x2] sm:$0x1]
  %v320 = vld [vmem:[%s3 + $0x3] sm:$0x1]
  %v321 = vld [vmem:[%s3 + $0x4] sm:$0x1]
  %v322 = vld [vmem:[%s3 + $0x5] sm:$0x1]
  %v323 = vld [vmem:[%s3 + $0x6] sm:$0x1]
  %v324 = vld [vmem:[%s3 + $0x7] sm:$0x1]
  %v325 = vld [vmem:[%s3 + $0x8] sm:$0x1]
  %v326 = vld [vmem:[%s3 + $0x9] sm:$0x1]
  %v327 = vld [vmem:[%s3 + $0xa] sm:$0x1]
  %v328 = vld [vmem:[%s3 + $0xb] sm:$0x1]
  %v329 = vlaneseq
  %v330 = vshrl.u32 %v329, 7
  %v331 = vsub.s32 0, %v330
  %v332 = vrot.slane %v317, %v331
  %v333 = vmul.f32 %v183, %v332
  %v334 = vmul.f32 %v188, %v332
  %v335 = vmul.f32 %v193, %v332
  %v336 = vmul.f32 %v198, %v332
  %v337 = vmul.f32 %v203, %v332
  %v338 = vlaneseq
  %v339 = vshrl.u32 %v338, 7
  %v340 = vsub.s32 0, %v339
  %v341 = vrot.slane %v318, %v340
  %v342 = vmul.f32 %v294, %v341
  %v343 = vmul.f32 %v299, %v341
  %v344 = vmul.f32 %v304, %v341
  %v345 = vmul.f32 %v309, %v341
  %v346 = vmul.f32 %v314, %v341
  %v347 = vsub.f32 %v333, %v342
  %v348 = vsub.f32 %v334, %v343
  %v349 = vsub.f32 %v335, %v344
  %v350 = vsub.f32 %v336, %v345
  %v351 = vsub.f32 %v337, %v346
  %v352 = vlaneseq
  %v353 = vshrl.u32 %v352, 7
  %v354 = vsub.s32 0, %v353
  %v355 = vrot.slane %v319, %v354
  %v356 = vadd.f32 %v347, %v355
  %v357 = vadd.f32 %v348, %v355
  %v358 = vadd.f32 %v349, %v355
  %v359 = vadd.f32 %v350, %v355
  %v360 = vadd.f32 %v351, %v355
  %v361 = vmax.f32 %v356, 0.0
  %v362 = vmax.f32 %v357, 0.0
  %v363 = vmax.f32 %v358, 0.0
  %v364 = vmax.f32 %v359, 0.0
  %v365 = vmax.f32 %v360, 0.0
  %v366 = vmul.f32 %v294, %v332
  %v367 = vmul.f32 %v299, %v332
  %v368 = vmul.f32 %v304, %v332
  %v369 = vmul.f32 %v309, %v332
  %v370 = vmul.f32 %v314, %v332
  %v371 = vmul.f32 %v183, %v341
  %v372 = vmul.f32 %v188, %v341
  %v373 = vmul.f32 %v193, %v341
  %v374 = vmul.f32 %v198, %v341
  %v375 = vmul.f32 %v203, %v341
  %v376 = vadd.f32 %v366, %v371
  %v377 = vadd.f32 %v367, %v372
  %v378 = vadd.f32 %v368, %v373
  %v379 = vadd.f32 %v369, %v374
  %v380 = vadd.f32 %v370, %v375
  %v381 = vlaneseq
  %v382 = vshrl.u32 %v381, 7
  %v383 = vsub.s32 0, %v382
  %v384 = vrot.slane %v320, %v383
  %v385 = vadd.f32 %v376, %v384
  %v386 = vadd.f32 %v377, %v384
  %v387 = vadd.f32 %v378, %v384
  %v388 = vadd.f32 %v379, %v384
  %v389 = vadd.f32 %v380, %v384
  %v390 = vmax.f32 %v385, 0.0
  %v391 = vmax.f32 %v386, 0.0
  %v392 = vmax.f32 %v387, 0.0
  %v393 = vmax.f32 %v388, 0.0
  %v394 = vmax.f32 %v389, 0.0
  %vm395 = vcmp.gt.f32.partialorder %v361, 0.01
  %vm396 = vcmp.gt.f32.partialorder %v362, 0.01
  %vm397 = vcmp.gt.f32.partialorder %v363, 0.01
  %vm398 = vcmp.gt.f32.partialorder %v364, 0.01
  %vm399 = vcmp.gt.f32.partialorder %v365, 0.01
  %v400 = vsub.f32 %v361, 0.01
  %v401 = vsub.f32 %v362, 0.01
  %v402 = vsub.f32 %v363, 0.01
  %v403 = vsub.f32 %v364, 0.01
  %v404 = vsub.f32 %v365, 0.01
  %vm405 = vcmp.lt.f32.partialorder %v361, -0.01
  %vm406 = vcmp.lt.f32.partialorder %v362, -0.01
  %vm407 = vcmp.lt.f32.partialorder %v363, -0.01
  %vm408 = vcmp.lt.f32.partialorder %v364, -0.01
  %vm409 = vcmp.lt.f32.partialorder %v365, -0.01
  %v410 = vadd.f32 %v361, 0.01
  %v411 = vadd.f32 %v362, 0.01
  %v412 = vadd.f32 %v363, 0.01
  %v413 = vadd.f32 %v364, 0.01
  %v414 = vadd.f32 %v365, 0.01
  %v415 = vsel %vm405, %v410, 0.0
  %v416 = vsel %vm406, %v411, 0.0
  %v417 = vsel %vm407, %v412, 0.0
  %v418 = vsel %vm408, %v413, 0.0
  %v419 = vsel %vm409, %v414, 0.0
  %v420 = vsel %vm395, %v400, %v415
  %v421 = vsel %vm396, %v401, %v416
  %v422 = vsel %vm397, %v402, %v417
  %v423 = vsel %vm398, %v403, %v418
  %v424 = vsel %vm399, %v404, %v419
  %vm425 = vcmp.gt.f32.partialorder %v390, 0.01
  %vm426 = vcmp.gt.f32.partialorder %v391, 0.01
  %vm427 = vcmp.gt.f32.partialorder %v392, 0.01
  %vm428 = vcmp.gt.f32.partialorder %v393, 0.01
  %vm429 = vcmp.gt.f32.partialorder %v394, 0.01
  %v430 = vsub.f32 %v390, 0.01
  %v431 = vsub.f32 %v391, 0.01
  %v432 = vsub.f32 %v392, 0.01
  %v433 = vsub.f32 %v393, 0.01
  %v434 = vsub.f32 %v394, 0.01
  %vm435 = vcmp.lt.f32.partialorder %v390, -0.01
  %vm436 = vcmp.lt.f32.partialorder %v391, -0.01
  %vm437 = vcmp.lt.f32.partialorder %v392, -0.01
  %vm438 = vcmp.lt.f32.partialorder %v393, -0.01
  %vm439 = vcmp.lt.f32.partialorder %v394, -0.01
  %v440 = vadd.f32 %v390, 0.01
  %v441 = vadd.f32 %v391, 0.01
  %v442 = vadd.f32 %v392, 0.01
  %v443 = vadd.f32 %v393, 0.01
  %v444 = vadd.f32 %v394, 0.01
  %v445 = vsel %vm435, %v440, 0.0
  %v446 = vsel %vm436, %v441, 0.0
  %v447 = vsel %vm437, %v442, 0.0
  %v448 = vsel %vm438, %v443, 0.0
  %v449 = vsel %vm439, %v444, 0.0
  %v450 = vsel %vm425, %v430, %v445
  %v451 = vsel %vm426, %v431, %v446
  %v452 = vsel %vm427, %v432, %v447
  %v453 = vsel %vm428, %v433, %v448
  %v454 = vsel %vm429, %v434, %v449
  %v455 = vlaneseq
  %v456 = vshrl.u32 %v455, 7
  %v457 = vsub.s32 0, %v456
  %v458 = vrot.slane %v321, %v457
  %v459 = vmul.f32 %v361, %v458
  %v460 = vmul.f32 %v362, %v458
  %v461 = vmul.f32 %v363, %v458
  %v462 = vmul.f32 %v364, %v458
  %v463 = vmul.f32 %v365, %v458
  %v464 = vlaneseq
  %v465 = vshrl.u32 %v464, 7
  %v466 = vsub.s32 0, %v465
  %v467 = vrot.slane %v322, %v466
  %v468 = vmul.f32 %v390, %v467
  %v469 = vmul.f32 %v391, %v467
  %v470 = vmul.f32 %v392, %v467
  %v471 = vmul.f32 %v393, %v467
  %v472 = vmul.f32 %v394, %v467
  %v473 = vsub.f32 %v459, %v468
  %v474 = vsub.f32 %v460, %v469
  %v475 = vsub.f32 %v461, %v470
  %v476 = vsub.f32 %v462, %v471
  %v477 = vsub.f32 %v463, %v472
  %v478 = vlaneseq
  %v479 = vshrl.u32 %v478, 7
  %v480 = vsub.s32 0, %v479
  %v481 = vrot.slane %v323, %v480
  %v482 = vadd.f32 %v473, %v481
  %v483 = vadd.f32 %v474, %v481
  %v484 = vadd.f32 %v475, %v481
  %v485 = vadd.f32 %v476, %v481
  %v486 = vadd.f32 %v477, %v481
  %v487 = vmax.f32 %v482, 0.0
  %v488 = vmax.f32 %v483, 0.0
  %v489 = vmax.f32 %v484, 0.0
  %v490 = vmax.f32 %v485, 0.0
  %v491 = vmax.f32 %v486, 0.0
  %v492 = vmul.f32 %v390, %v458
  %v493 = vmul.f32 %v391, %v458
  %v494 = vmul.f32 %v392, %v458
  %v495 = vmul.f32 %v393, %v458
  %v496 = vmul.f32 %v394, %v458
  %v497 = vmul.f32 %v361, %v467
  %v498 = vmul.f32 %v362, %v467
  %v499 = vmul.f32 %v363, %v467
  %v500 = vmul.f32 %v364, %v467
  %v501 = vmul.f32 %v365, %v467
  %v502 = vadd.f32 %v492, %v497
  %v503 = vadd.f32 %v493, %v498
  %v504 = vadd.f32 %v494, %v499
  %v505 = vadd.f32 %v495, %v500
  %v506 = vadd.f32 %v496, %v501
  %v507 = vlaneseq
  %v508 = vshrl.u32 %v507, 7
  %v509 = vsub.s32 0, %v508
  %v510 = vrot.slane %v324, %v509
  %v511 = vadd.f32 %v502, %v510
  %v512 = vadd.f32 %v503, %v510
  %v513 = vadd.f32 %v504, %v510
  %v514 = vadd.f32 %v505, %v510
  %v515 = vadd.f32 %v506, %v510
  %v516 = vmax.f32 %v511, 0.0
  %v517 = vmax.f32 %v512, 0.0
  %v518 = vmax.f32 %v513, 0.0
  %v519 = vmax.f32 %v514, 0.0
  %v520 = vmax.f32 %v515, 0.0
  %vm521 = vcmp.gt.f32.partialorder %v487, 0.01
  %vm522 = vcmp.gt.f32.partialorder %v488, 0.01
  %vm523 = vcmp.gt.f32.partialorder %v489, 0.01
  %vm524 = vcmp.gt.f32.partialorder %v490, 0.01
  %vm525 = vcmp.gt.f32.partialorder %v491, 0.01
  %v526 = vsub.f32 %v487, 0.01
  %v527 = vsub.f32 %v488, 0.01
  %v528 = vsub.f32 %v489, 0.01
  %v529 = vsub.f32 %v490, 0.01
  %v530 = vsub.f32 %v491, 0.01
  %vm531 = vcmp.lt.f32.partialorder %v487, -0.01
  %vm532 = vcmp.lt.f32.partialorder %v488, -0.01
  %vm533 = vcmp.lt.f32.partialorder %v489, -0.01
  %vm534 = vcmp.lt.f32.partialorder %v490, -0.01
  %vm535 = vcmp.lt.f32.partialorder %v491, -0.01
  %v536 = vadd.f32 %v487, 0.01
  %v537 = vadd.f32 %v488, 0.01
  %v538 = vadd.f32 %v489, 0.01
  %v539 = vadd.f32 %v490, 0.01
  %v540 = vadd.f32 %v491, 0.01
  %v541 = vsel %vm531, %v536, 0.0
  %v542 = vsel %vm532, %v537, 0.0
  %v543 = vsel %vm533, %v538, 0.0
  %v544 = vsel %vm534, %v539, 0.0
  %v545 = vsel %vm535, %v540, 0.0
  %v546 = vsel %vm521, %v526, %v541
  %v547 = vsel %vm522, %v527, %v542
  %v548 = vsel %vm523, %v528, %v543
  %v549 = vsel %vm524, %v529, %v544
  %v550 = vsel %vm525, %v530, %v545
  %v551 = vadd.f32 %v546, %v420
  %v552 = vadd.f32 %v547, %v421
  %v553 = vadd.f32 %v548, %v422
  %v554 = vadd.f32 %v549, %v423
  %v555 = vadd.f32 %v550, %v424
  %vm556 = vcmp.gt.f32.partialorder %v516, 0.01
  %vm557 = vcmp.gt.f32.partialorder %v517, 0.01
  %vm558 = vcmp.gt.f32.partialorder %v518, 0.01
  %vm559 = vcmp.gt.f32.partialorder %v519, 0.01
  %vm560 = vcmp.gt.f32.partialorder %v520, 0.01
  %v561 = vsub.f32 %v516, 0.01
  %v562 = vsub.f32 %v517, 0.01
  %v563 = vsub.f32 %v518, 0.01
  %v564 = vsub.f32 %v519, 0.01
  %v565 = vsub.f32 %v520, 0.01
  %vm566 = vcmp.lt.f32.partialorder %v516, -0.01
  %vm567 = vcmp.lt.f32.partialorder %v517, -0.01
  %vm568 = vcmp.lt.f32.partialorder %v518, -0.01
  %vm569 = vcmp.lt.f32.partialorder %v519, -0.01
  %vm570 = vcmp.lt.f32.partialorder %v520, -0.01
  %v571 = vadd.f32 %v516, 0.01
  %v572 = vadd.f32 %v517, 0.01
  %v573 = vadd.f32 %v518, 0.01
  %v574 = vadd.f32 %v519, 0.01
  %v575 = vadd.f32 %v520, 0.01
  %v576 = vsel %vm566, %v571, 0.0
  %v577 = vsel %vm567, %v572, 0.0
  %v578 = vsel %vm568, %v573, 0.0
  %v579 = vsel %vm569, %v574, 0.0
  %v580 = vsel %vm570, %v575, 0.0
  %v581 = vsel %vm556, %v561, %v576
  %v582 = vsel %vm557, %v562, %v577
  %v583 = vsel %vm558, %v563, %v578
  %v584 = vsel %vm559, %v564, %v579
  %v585 = vsel %vm560, %v565, %v580
  %v586 = vadd.f32 %v581, %v450
  %v587 = vadd.f32 %v582, %v451
  %v588 = vadd.f32 %v583, %v452
  %v589 = vadd.f32 %v584, %v453
  %v590 = vadd.f32 %v585, %v454
  %v591 = vlaneseq
  %v592 = vshrl.u32 %v591, 7
  %v593 = vsub.s32 0, %v592
  %v594 = vrot.slane %v325, %v593
  %v595 = vmul.f32 %v487, %v594
  %v596 = vmul.f32 %v488, %v594
  %v597 = vmul.f32 %v489, %v594
  %v598 = vmul.f32 %v490, %v594
  %v599 = vmul.f32 %v491, %v594
  %v600 = vlaneseq
  %v601 = vshrl.u32 %v600, 7
  %v602 = vsub.s32 0, %v601
  %v603 = vrot.slane %v326, %v602
  %v604 = vmul.f32 %v516, %v603
  %v605 = vmul.f32 %v517, %v603
  %v606 = vmul.f32 %v518, %v603
  %v607 = vmul.f32 %v519, %v603
  %v608 = vmul.f32 %v520, %v603
  %v609 = vsub.f32 %v595, %v604
  %v610 = vsub.f32 %v596, %v605
  %v611 = vsub.f32 %v597, %v606
  %v612 = vsub.f32 %v598, %v607
  %v613 = vsub.f32 %v599, %v608
  %v614 = vlaneseq
  %v615 = vshrl.u32 %v614, 7
  %v616 = vsub.s32 0, %v615
  %v617 = vrot.slane %v327, %v616
  %v618 = vadd.f32 %v609, %v617
  %v619 = vadd.f32 %v610, %v617
  %v620 = vadd.f32 %v611, %v617
  %v621 = vadd.f32 %v612, %v617
  %v622 = vadd.f32 %v613, %v617
  %v623 = vmax.f32 %v618, 0.0
  %v624 = vmax.f32 %v619, 0.0
  %v625 = vmax.f32 %v620, 0.0
  %v626 = vmax.f32 %v621, 0.0
  %v627 = vmax.f32 %v622, 0.0
  %v628 = vmul.f32 %v516, %v594
  %v629 = vmul.f32 %v517, %v594
  %v630 = vmul.f32 %v518, %v594
  %v631 = vmul.f32 %v519, %v594
  %v632 = vmul.f32 %v520, %v594
  %v633 = vmul.f32 %v487, %v603
  %v634 = vmul.f32 %v488, %v603
  %v635 = vmul.f32 %v489, %v603
  %v636 = vmul.f32 %v490, %v603
  %v637 = vmul.f32 %v491, %v603
  %v638 = vadd.f32 %v628, %v633
  %v639 = vadd.f32 %v629, %v634
  %v640 = vadd.f32 %v630, %v635
  %v641 = vadd.f32 %v631, %v636
  %v642 = vadd.f32 %v632, %v637
  %v643 = vlaneseq
  %v644 = vshrl.u32 %v643, 7
  %v645 = vsub.s32 0, %v644
  %v646 = vrot.slane %v328, %v645
  %v647 = vadd.f32 %v638, %v646
  %v648 = vadd.f32 %v639, %v646
  %v649 = vadd.f32 %v640, %v646
  %v650 = vadd.f32 %v641, %v646
  %v651 = vadd.f32 %v642, %v646
  %v652 = vmax.f32 %v647, 0.0
  %v653 = vmax.f32 %v648, 0.0
  %v654 = vmax.f32 %v649, 0.0
  %v655 = vmax.f32 %v650, 0.0
  %v656 = vmax.f32 %v651, 0.0
  %vm657 = vcmp.gt.f32.partialorder %v623, 0.01
  %vm658 = vcmp.gt.f32.partialorder %v624, 0.01
  %vm659 = vcmp.gt.f32.partialorder %v625, 0.01
  %vm660 = vcmp.gt.f32.partialorder %v626, 0.01
  %vm661 = vcmp.gt.f32.partialorder %v627, 0.01
  %v662 = vsub.f32 %v623, 0.01
  %v663 = vsub.f32 %v624, 0.01
  %v664 = vsub.f32 %v625, 0.01
  %v665 = vsub.f32 %v626, 0.01
  %v666 = vsub.f32 %v627, 0.01
  %vm667 = vcmp.lt.f32.partialorder %v623, -0.01
  %vm668 = vcmp.lt.f32.partialorder %v624, -0.01
  %vm669 = vcmp.lt.f32.partialorder %v625, -0.01
  %vm670 = vcmp.lt.f32.partialorder %v626, -0.01
  %vm671 = vcmp.lt.f32.partialorder %v627, -0.01
  %v672 = vadd.f32 %v623, 0.01
  %v673 = vadd.f32 %v624, 0.01
  %v674 = vadd.f32 %v625, 0.01
  %v675 = vadd.f32 %v626, 0.01
  %v676 = vadd.f32 %v627, 0.01
  %v677 = vsel %vm667, %v672, 0.0
  %v678 = vsel %vm668, %v673, 0.0
  %v679 = vsel %vm669, %v674, 0.0
  %v680 = vsel %vm670, %v675, 0.0
  %v681 = vsel %vm671, %v676, 0.0
  %v682 = vsel %vm657, %v662, %v677
  %v683 = vsel %vm658, %v663, %v678
  %v684 = vsel %vm659, %v664, %v679
  %v685 = vsel %vm660, %v665, %v680
  %v686 = vsel %vm661, %v666, %v681
  %v687 = vadd.f32 %v682, %v551
  %v688 = vadd.f32 %v683, %v552
  %v689 = vadd.f32 %v684, %v553
  %v690 = vadd.f32 %v685, %v554
  %v691 = vadd.f32 %v686, %v555
  %v692 = vadd.f32 %v687, %v183
  %v693 = vadd.f32 %v688, %v188
  %v694 = vadd.f32 %v689, %v193
  %v695 = vadd.f32 %v690, %v198
  %v696 = vadd.f32 %v691, %v203
  %vm697 = vcmp.gt.f32.partialorder %v652, 0.01
  %vm698 = vcmp.gt.f32.partialorder %v653, 0.01
  %vm699 = vcmp.gt.f32.partialorder %v654, 0.01
  %vm700 = vcmp.gt.f32.partialorder %v655, 0.01
  %vm701 = vcmp.gt.f32.partialorder %v656, 0.01
  %v702 = vsub.f32 %v652, 0.01
  %v703 = vsub.f32 %v653, 0.01
  %v704 = vsub.f32 %v654, 0.01
  %v705 = vsub.f32 %v655, 0.01
  %v706 = vsub.f32 %v656, 0.01
  %vm707 = vcmp.lt.f32.partialorder %v652, -0.01
  %vm708 = vcmp.lt.f32.partialorder %v653, -0.01
  %vm709 = vcmp.lt.f32.partialorder %v654, -0.01
  %vm710 = vcmp.lt.f32.partialorder %v655, -0.01
  %vm711 = vcmp.lt.f32.partialorder %v656, -0.01
  %v712 = vadd.f32 %v652, 0.01
  %v713 = vadd.f32 %v653, 0.01
  %v714 = vadd.f32 %v654, 0.01
  %v715 = vadd.f32 %v655, 0.01
  %v716 = vadd.f32 %v656, 0.01
  %v717 = vsel %vm707, %v712, 0.0
  %v718 = vsel %vm708, %v713, 0.0
  %v719 = vsel %vm709, %v714, 0.0
  %v720 = vsel %vm710, %v715, 0.0
  %v721 = vsel %vm711, %v716, 0.0
  %v722 = vsel %vm697, %v702, %v717
  %v723 = vsel %vm698, %v703, %v718
  %v724 = vsel %vm699, %v704, %v719
  %v725 = vsel %vm700, %v705, %v720
  %v726 = vsel %vm701, %v706, %v721
  %v727 = vadd.f32 %v722, %v586
  %v728 = vadd.f32 %v723, %v587
  %v729 = vadd.f32 %v724, %v588
  %v730 = vadd.f32 %v725, %v589
  %v731 = vadd.f32 %v726, %v590
  %v732 = vadd.f32 %v727, %v294
  %v733 = vadd.f32 %v728, %v299
  %v734 = vadd.f32 %v729, %v304
  %v735 = vadd.f32 %v730, %v309
  %v736 = vadd.f32 %v731, %v314
  %v737 = vld [vmem:[%s4] sm:$0xff]
  %v738 = vld [vmem:[%s4 + $0x8] sm:$0xff]
  %v739 = vld [vmem:[%s4 + $0x10] sm:$0xff]
  %v740 = vld [vmem:[%s4 + $0x18] sm:$0xff]
  %v741 = vld [vmem:[%s4 + $0x20] sm:$0xff]
  %v742 = vld [vmem:[%s4 + $0x28] sm:$0xff]
  %v743 = vld [vmem:[%s4 + $0x30] sm:$0xff]
  %v744 = vld [vmem:[%s4 + $0x38] sm:$0xff]
  %s745 = scalar_lea.vmem %s4, 64
  %v746 = vld [vmem:[%s745] sm:$0xff]
  %v747 = vld [vmem:[%s745 + $0x8] sm:$0xff]
  %v748 = vld [vmem:[%s745 + $0x10] sm:$0xff]
  %v749 = vld [vmem:[%s745 + $0x18] sm:$0xff]
  %v750 = vld [vmem:[%s745 + $0x20] sm:$0xff]
  %v751 = vld [vmem:[%s745 + $0x28] sm:$0xff]
  %v752 = vld [vmem:[%s745 + $0x30] sm:$0xff]
  %v753 = vld [vmem:[%s745 + $0x38] sm:$0xff]
  %vm754 = vcmask 277504
  %v756 = vsel %vm754, %v746, 0
  %v759 = vsel %vm754, %v747, 0
  %v762 = vsel %vm754, %v748, 0
  %v765 = vsel %vm754, %v749, 0
  %v768 = vsel %vm754, %v750, 0
  %v771 = vsel %vm754, %v751, 0
  %v774 = vsel %vm754, %v752, 0
  %v777 = vsel %vm754, %v753, 0
  %vm779 = vcmask 1041408
  %v781 = vsel %vm779, %v736, 0
  %783 = vmatprep.subr.mxu0 0.0
  %784 = vmatpush1.msra.mxu0 0.0
  %785 = vmatprep.subr.mxu0 0.0
  %786 = vmatpush1.msra.mxu0 0.0
  %787 = vmatprep.subr.mxu0 0.0
  %788 = vmatpush1.msra.mxu0 0.0
  %789 = vmatprep.subr.mxu0 0.0
  %790 = vmatpush1.msra.mxu0 0.0
  %791 = vmatprep.subr.mxu0 0.0
  %792 = vmatpush1.msra.mxu0 0.0
  %793 = vmatprep.subr.mxu0 0.0
  %794 = vmatpush1.msra.mxu0 0.0
  %795 = vmatprep.subr.mxu0 0.0
  %796 = vmatpush1.msra.mxu0 0.0
  %797 = vmatprep.subr.mxu0 0.0
  %798 = vmatpush1.msra.mxu0 0.0
  %799 = vmatprep.subr.mxu0 0.0
  %800 = vmatpush1.msra.mxu0 0.0
  %801 = vmatprep.subr.mxu0 0.0
  %802 = vmatpush1.msra.mxu0 0.0
  %803 = vmatprep.subr.mxu0 0.0
  %804 = vmatpush1.msra.mxu0 0.0
  %805 = vmatprep.subr.mxu0 0.0
  %806 = vmatpush1.msra.mxu0 %v781
  %807 = vmatprep.subr.mxu0 0.0
  %808 = vmatpush1.msra.mxu0 %v735
  %809 = vmatprep.subr.mxu0 0.0
  %810 = vmatpush1.msra.mxu0 %v734
  %811 = vmatprep.subr.mxu0 0.0
  %812 = vmatpush1.msra.mxu0 %v733
  %813 = vmatprep.subr.mxu0 0.0
  %814 = vmatpush1.msra.mxu0 %v732
  %815 = vmatprep.subr.mxu0 0.0
  %816 = vmatpush2.msra.mxu0 0.0
  %817 = vmatprep.subr.mxu0 0.0
  %818 = vmatpush2.msra.mxu0 0.0
  %819 = vmatprep.subr.mxu0 0.0
  %820 = vmatpush2.msra.mxu0 0.0
  %821 = vmatprep.subr.mxu0 0.0
  %822 = vmatpush2.msra.mxu0 0.0
  %823 = vmatprep.subr.mxu0 0.0
  %824 = vmatpush2.msra.mxu0 0.0
  %825 = vmatprep.subr.mxu0 0.0
  %826 = vmatpush2.msra.mxu0 0.0
  %827 = vmatprep.subr.mxu0 0.0
  %828 = vmatpush2.msra.mxu0 0.0
  %829 = vmatprep.subr.mxu0 0.0
  %830 = vmatpush2.msra.mxu0 0.0
  %831 = vmatprep.subr.mxu0 0.0
  %832 = vmatpush2.msra.mxu0 0.0
  %833 = vmatprep.subr.mxu0 0.0
  %834 = vmatpush2.msra.mxu0 0.0
  %835 = vmatprep.subr.mxu0 0.0
  %836 = vmatpush2.msra.mxu0 0.0
  %837 = vmatprep.subr.mxu0 0.0
  %838 = vmatpush2.msra.mxu0 0.0
  %839 = vmatprep.subr.mxu0 0.0
  %840 = vmatpush2.msra.mxu0 0.0
  %841 = vmatprep.subr.mxu0 0.0
  %842 = vmatpush2.msra.mxu0 0.0
  %843 = vmatprep.subr.mxu0 0.0
  %844 = vmatpush2.msra.mxu0 0.0
  %845 = vmatprep.subr.mxu0 0.0
  %846 = vmatpush2.msra.mxu0 0.0
  %847 = vmatprep.mubr.f32.mxu0 0.0
  %848 = vmatmul.mubr.f32.gmra.mxu0 %v756
  %v849 = vpop.f32.mrf.mxu0
  %v850 = vadd.f32 0.0, %v849
  %v851 = vpop.f32.mrf.mxu0
  %852 = vmatprep.mubr.f32.mxu0 0.0
  %853 = vmatmul.mubr.f32.gmra.mxu0 %v759
  %v854 = vpop.f32.mrf.mxu0
  %v855 = vadd.f32 0.0, %v854
  %v856 = vpop.f32.mrf.mxu0
  %857 = vmatprep.mubr.f32.mxu0 0.0
  %858 = vmatmul.mubr.f32.gmra.mxu0 %v762
  %v859 = vpop.f32.mrf.mxu0
  %v860 = vadd.f32 0.0, %v859
  %v861 = vpop.f32.mrf.mxu0
  %862 = vmatprep.mubr.f32.mxu0 0.0
  %863 = vmatmul.mubr.f32.gmra.mxu0 %v765
  %v864 = vpop.f32.mrf.mxu0
  %v865 = vadd.f32 0.0, %v864
  %v866 = vpop.f32.mrf.mxu0
  %867 = vmatprep.mubr.f32.mxu0 0.0
  %868 = vmatmul.mubr.f32.gmra.mxu0 %v768
  %v869 = vpop.f32.mrf.mxu0
  %v870 = vadd.f32 0.0, %v869
  %v871 = vpop.f32.mrf.mxu0
  %872 = vmatprep.mubr.f32.mxu0 0.0
  %873 = vmatmul.mubr.f32.gmra.mxu0 %v771
  %v874 = vpop.f32.mrf.mxu0
  %v875 = vadd.f32 0.0, %v874
  %v876 = vpop.f32.mrf.mxu0
  %877 = vmatprep.mubr.f32.mxu0 0.0
  %878 = vmatmul.mubr.f32.gmra.mxu0 %v774
  %v879 = vpop.f32.mrf.mxu0
  %v880 = vadd.f32 0.0, %v879
  %v881 = vpop.f32.mrf.mxu0
  %882 = vmatprep.mubr.f32.mxu0 0.0
  %883 = vmatmul.mubr.f32.gmra.mxu0 %v777
  %v884 = vpop.f32.mrf.mxu0
  %v885 = vadd.f32 0.0, %v884
  %v886 = vpop.f32.mrf.mxu0
  %887 = vdwg.mxu0
  %v889 = vsel %vm754, %v737, 0
  %v892 = vsel %vm754, %v738, 0
  %v895 = vsel %vm754, %v739, 0
  %v898 = vsel %vm754, %v740, 0
  %v901 = vsel %vm754, %v741, 0
  %v904 = vsel %vm754, %v742, 0
  %v907 = vsel %vm754, %v743, 0
  %v910 = vsel %vm754, %v744, 0
  %v913 = vsel %vm779, %v696, 0
  %915 = vmatprep.subr.mxu0 0.0
  %916 = vmatpush1.msra.mxu0 0.0
  %917 = vmatprep.subr.mxu0 0.0
  %918 = vmatpush1.msra.mxu0 0.0
  %919 = vmatprep.subr.mxu0 0.0
  %920 = vmatpush1.msra.mxu0 0.0
  %921 = vmatprep.subr.mxu0 0.0
  %922 = vmatpush1.msra.mxu0 0.0
  %923 = vmatprep.subr.mxu0 0.0
  %924 = vmatpush1.msra.mxu0 0.0
  %925 = vmatprep.subr.mxu0 0.0
  %926 = vmatpush1.msra.mxu0 0.0
  %927 = vmatprep.subr.mxu0 0.0
  %928 = vmatpush1.msra.mxu0 0.0
  %929 = vmatprep.subr.mxu0 0.0
  %930 = vmatpush1.msra.mxu0 0.0
  %931 = vmatprep.subr.mxu0 0.0
  %932 = vmatpush1.msra.mxu0 0.0
  %933 = vmatprep.subr.mxu0 0.0
  %934 = vmatpush1.msra.mxu0 0.0
  %935 = vmatprep.subr.mxu0 0.0
  %936 = vmatpush1.msra.mxu0 0.0
  %937 = vmatprep.subr.mxu0 0.0
  %938 = vmatpush1.msra.mxu0 %v913
  %939 = vmatprep.subr.mxu0 0.0
  %940 = vmatpush1.msra.mxu0 %v695
  %941 = vmatprep.subr.mxu0 0.0
  %942 = vmatpush1.msra.mxu0 %v694
  %943 = vmatprep.subr.mxu0 0.0
  %944 = vmatpush1.msra.mxu0 %v693
  %945 = vmatprep.subr.mxu0 0.0
  %946 = vmatpush1.msra.mxu0 %v692
  %947 = vmatprep.subr.mxu0 0.0
  %948 = vmatpush2.msra.mxu0 0.0
  %949 = vmatprep.subr.mxu0 0.0
  %950 = vmatpush2.msra.mxu0 0.0
  %951 = vmatprep.subr.mxu0 0.0
  %952 = vmatpush2.msra.mxu0 0.0
  %953 = vmatprep.subr.mxu0 0.0
  %954 = vmatpush2.msra.mxu0 0.0
  %955 = vmatprep.subr.mxu0 0.0
  %956 = vmatpush2.msra.mxu0 0.0
  %957 = vmatprep.subr.mxu0 0.0
  %958 = vmatpush2.msra.mxu0 0.0
  %959 = vmatprep.subr.mxu0 0.0
  %960 = vmatpush2.msra.mxu0 0.0
  %961 = vmatprep.subr.mxu0 0.0
  %962 = vmatpush2.msra.mxu0 0.0
  %963 = vmatprep.subr.mxu0 0.0
  %964 = vmatpush2.msra.mxu0 0.0
  %965 = vmatprep.subr.mxu0 0.0
  %966 = vmatpush2.msra.mxu0 0.0
  %967 = vmatprep.subr.mxu0 0.0
  %968 = vmatpush2.msra.mxu0 0.0
  %969 = vmatprep.subr.mxu0 0.0
  %970 = vmatpush2.msra.mxu0 0.0
  %971 = vmatprep.subr.mxu0 0.0
  %972 = vmatpush2.msra.mxu0 0.0
  %973 = vmatprep.subr.mxu0 0.0
  %974 = vmatpush2.msra.mxu0 0.0
  %975 = vmatprep.subr.mxu0 0.0
  %976 = vmatpush2.msra.mxu0 0.0
  %977 = vmatprep.subr.mxu0 0.0
  %978 = vmatpush2.msra.mxu0 0.0
  %979 = vmatprep.mubr.f32.mxu0 0.0
  %980 = vmatmul.mubr.f32.gmra.mxu0 %v889
  %v981 = vpop.f32.mrf.mxu0
  %v982 = vadd.f32 %v850, %v981
  %v983 = vpop.f32.mrf.mxu0
  %984 = vmatprep.mubr.f32.mxu0 0.0
  %985 = vmatmul.mubr.f32.gmra.mxu0 %v892
  %v986 = vpop.f32.mrf.mxu0
  %v987 = vadd.f32 %v855, %v986
  %v988 = vpop.f32.mrf.mxu0
  %989 = vmatprep.mubr.f32.mxu0 0.0
  %990 = vmatmul.mubr.f32.gmra.mxu0 %v895
  %v991 = vpop.f32.mrf.mxu0
  %v992 = vadd.f32 %v860, %v991
  %v993 = vpop.f32.mrf.mxu0
  %994 = vmatprep.mubr.f32.mxu0 0.0
  %995 = vmatmul.mubr.f32.gmra.mxu0 %v898
  %v996 = vpop.f32.mrf.mxu0
  %v997 = vadd.f32 %v865, %v996
  %v998 = vpop.f32.mrf.mxu0
  %999 = vmatprep.mubr.f32.mxu0 0.0
  %1000 = vmatmul.mubr.f32.gmra.mxu0 %v901
  %v1001 = vpop.f32.mrf.mxu0
  %v1002 = vadd.f32 %v870, %v1001
  %v1003 = vpop.f32.mrf.mxu0
  %1004 = vmatprep.mubr.f32.mxu0 0.0
  %1005 = vmatmul.mubr.f32.gmra.mxu0 %v904
  %v1006 = vpop.f32.mrf.mxu0
  %v1007 = vadd.f32 %v875, %v1006
  %v1008 = vpop.f32.mrf.mxu0
  %1009 = vmatprep.mubr.f32.mxu0 0.0
  %1010 = vmatmul.mubr.f32.gmra.mxu0 %v907
  %v1011 = vpop.f32.mrf.mxu0
  %v1012 = vadd.f32 %v880, %v1011
  %v1013 = vpop.f32.mrf.mxu0
  %1014 = vmatprep.mubr.f32.mxu0 0.0
  %1015 = vmatmul.mubr.f32.gmra.mxu0 %v910
  %v1016 = vpop.f32.mrf.mxu0
  %v1017 = vadd.f32 %v885, %v1016
  %v1018 = vpop.f32.mrf.mxu0
  %1019 = vdwg.mxu0
  %v1020 = vld [vmem:[%s5] sm:$0xff]
  %v1021 = vld [vmem:[%s5 + $0x8] sm:$0xff]
  %v1022 = vld [vmem:[%s5 + $0x10] sm:$0xff]
  %v1023 = vld [vmem:[%s5 + $0x18] sm:$0xff]
  %v1024 = vld [vmem:[%s5 + $0x20] sm:$0xff]
  %v1025 = vld [vmem:[%s5 + $0x28] sm:$0xff]
  %v1026 = vld [vmem:[%s5 + $0x30] sm:$0xff]
  %v1027 = vld [vmem:[%s5 + $0x38] sm:$0xff]
  %vm1028 = vcmask 261120
  %v1030 = vsel %vm1028, %v987, 0
  %1032 = vmatprep.subr.mxu0 0.0
  %1033 = vmatpush1.msra.mxu0 0.0
  %1034 = vmatprep.subr.mxu0 0.0
  %1035 = vmatpush1.msra.mxu0 0.0
  %1036 = vmatprep.subr.mxu0 0.0
  %1037 = vmatpush1.msra.mxu0 0.0
  %1038 = vmatprep.subr.mxu0 0.0
  %1039 = vmatpush1.msra.mxu0 0.0
  %1040 = vmatprep.subr.mxu0 0.0
  %1041 = vmatpush1.msra.mxu0 0.0
  %1042 = vmatprep.subr.mxu0 0.0
  %1043 = vmatpush1.msra.mxu0 0.0
  %1044 = vmatprep.subr.mxu0 0.0
  %1045 = vmatpush1.msra.mxu0 0.0
  %1046 = vmatprep.subr.mxu0 0.0
  %1047 = vmatpush1.msra.mxu0 0.0
  %1048 = vmatprep.subr.mxu0 0.0
  %1049 = vmatpush1.msra.mxu0 0.0
  %1050 = vmatprep.subr.mxu0 0.0
  %1051 = vmatpush1.msra.mxu0 0.0
  %1052 = vmatprep.subr.mxu0 0.0
  %1053 = vmatpush1.msra.mxu0 0.0
  %1054 = vmatprep.subr.mxu0 0.0
  %1055 = vmatpush1.msra.mxu0 0.0
  %1056 = vmatprep.subr.mxu0 0.0
  %1057 = vmatpush1.msra.mxu0 %v1027
  %1058 = vmatprep.subr.mxu0 0.0
  %1059 = vmatpush1.msra.mxu0 %v1026
  %1060 = vmatprep.subr.mxu0 0.0
  %1061 = vmatpush1.msra.mxu0 %v1025
  %1062 = vmatprep.subr.mxu0 0.0
  %1063 = vmatpush1.msra.mxu0 %v1024
  %1064 = vmatprep.subr.mxu0 0.0
  %1065 = vmatpush2.msra.mxu0 0.0
  %1066 = vmatprep.subr.mxu0 0.0
  %1067 = vmatpush2.msra.mxu0 0.0
  %1068 = vmatprep.subr.mxu0 0.0
  %1069 = vmatpush2.msra.mxu0 0.0
  %1070 = vmatprep.subr.mxu0 0.0
  %1071 = vmatpush2.msra.mxu0 0.0
  %1072 = vmatprep.subr.mxu0 0.0
  %1073 = vmatpush2.msra.mxu0 0.0
  %1074 = vmatprep.subr.mxu0 0.0
  %1075 = vmatpush2.msra.mxu0 0.0
  %1076 = vmatprep.subr.mxu0 0.0
  %1077 = vmatpush2.msra.mxu0 0.0
  %1078 = vmatprep.subr.mxu0 0.0
  %1079 = vmatpush2.msra.mxu0 0.0
  %1080 = vmatprep.subr.mxu0 0.0
  %1081 = vmatpush2.msra.mxu0 0.0
  %1082 = vmatprep.subr.mxu0 0.0
  %1083 = vmatpush2.msra.mxu0 0.0
  %1084 = vmatprep.subr.mxu0 0.0
  %1085 = vmatpush2.msra.mxu0 0.0
  %1086 = vmatprep.subr.mxu0 0.0
  %1087 = vmatpush2.msra.mxu0 0.0
  %1088 = vmatprep.subr.mxu0 0.0
  %1089 = vmatpush2.msra.mxu0 0.0
  %1090 = vmatprep.subr.mxu0 0.0
  %1091 = vmatpush2.msra.mxu0 0.0
  %1092 = vmatprep.subr.mxu0 0.0
  %1093 = vmatpush2.msra.mxu0 0.0
  %1094 = vmatprep.subr.mxu0 0.0
  %1095 = vmatpush2.msra.mxu0 0.0
  %1096 = vmatprep.mubr.f32.mxu0 0.0
  %1097 = vmatmul.mubr.f32.gmra.mxu0 %v1030
  %v1098 = vpop.f32.mrf.mxu0
  %v1099 = vadd.f32 0.0, %v1098
  %v1100 = vpop.f32.mrf.mxu0
  %1101 = vdwg.mxu0
  %v1103 = vsel %vm1028, %v982, 0
  %1105 = vmatprep.subr.mxu0 0.0
  %1106 = vmatpush1.msra.mxu0 0.0
  %1107 = vmatprep.subr.mxu0 0.0
  %1108 = vmatpush1.msra.mxu0 0.0
  %1109 = vmatprep.subr.mxu0 0.0
  %1110 = vmatpush1.msra.mxu0 0.0
  %1111 = vmatprep.subr.mxu0 0.0
  %1112 = vmatpush1.msra.mxu0 0.0
  %1113 = vmatprep.subr.mxu0 0.0
  %1114 = vmatpush1.msra.mxu0 0.0
  %1115 = vmatprep.subr.mxu0 0.0
  %1116 = vmatpush1.msra.mxu0 0.0
  %1117 = vmatprep.subr.mxu0 0.0
  %1118 = vmatpush1.msra.mxu0 0.0
  %1119 = vmatprep.subr.mxu0 0.0
  %1120 = vmatpush1.msra.mxu0 0.0
  %1121 = vmatprep.subr.mxu0 0.0
  %1122 = vmatpush1.msra.mxu0 0.0
  %1123 = vmatprep.subr.mxu0 0.0
  %1124 = vmatpush1.msra.mxu0 0.0
  %1125 = vmatprep.subr.mxu0 0.0
  %1126 = vmatpush1.msra.mxu0 0.0
  %1127 = vmatprep.subr.mxu0 0.0
  %1128 = vmatpush1.msra.mxu0 0.0
  %1129 = vmatprep.subr.mxu0 0.0
  %1130 = vmatpush1.msra.mxu0 %v1023
  %1131 = vmatprep.subr.mxu0 0.0
  %1132 = vmatpush1.msra.mxu0 %v1022
  %1133 = vmatprep.subr.mxu0 0.0
  %1134 = vmatpush1.msra.mxu0 %v1021
  %1135 = vmatprep.subr.mxu0 0.0
  %1136 = vmatpush1.msra.mxu0 %v1020
  %1137 = vmatprep.subr.mxu0 0.0
  %1138 = vmatpush2.msra.mxu0 0.0
  %1139 = vmatprep.subr.mxu0 0.0
  %1140 = vmatpush2.msra.mxu0 0.0
  %1141 = vmatprep.subr.mxu0 0.0
  %1142 = vmatpush2.msra.mxu0 0.0
  %1143 = vmatprep.subr.mxu0 0.0
  %1144 = vmatpush2.msra.mxu0 0.0
  %1145 = vmatprep.subr.mxu0 0.0
  %1146 = vmatpush2.msra.mxu0 0.0
  %1147 = vmatprep.subr.mxu0 0.0
  %1148 = vmatpush2.msra.mxu0 0.0
  %1149 = vmatprep.subr.mxu0 0.0
  %1150 = vmatpush2.msra.mxu0 0.0
  %1151 = vmatprep.subr.mxu0 0.0
  %1152 = vmatpush2.msra.mxu0 0.0
  %1153 = vmatprep.subr.mxu0 0.0
  %1154 = vmatpush2.msra.mxu0 0.0
  %1155 = vmatprep.subr.mxu0 0.0
  %1156 = vmatpush2.msra.mxu0 0.0
  %1157 = vmatprep.subr.mxu0 0.0
  %1158 = vmatpush2.msra.mxu0 0.0
  %1159 = vmatprep.subr.mxu0 0.0
  %1160 = vmatpush2.msra.mxu0 0.0
  %1161 = vmatprep.subr.mxu0 0.0
  %1162 = vmatpush2.msra.mxu0 0.0
  %1163 = vmatprep.subr.mxu0 0.0
  %1164 = vmatpush2.msra.mxu0 0.0
  %1165 = vmatprep.subr.mxu0 0.0
  %1166 = vmatpush2.msra.mxu0 0.0
  %1167 = vmatprep.subr.mxu0 0.0
  %1168 = vmatpush2.msra.mxu0 0.0
  %1169 = vmatprep.mubr.f32.mxu0 0.0
  %1170 = vmatmul.mubr.f32.gmra.mxu0 %v1103
  %v1171 = vpop.f32.mrf.mxu0
  %v1172 = vadd.f32 %v1099, %v1171
  %v1173 = vpop.f32.mrf.mxu0
  %1174 = vdwg.mxu0
  %v1175 = vld [vmem:[%s5 + $0x40] sm:$0xff]
  %v1176 = vld [vmem:[%s5 + $0x48] sm:$0xff]
  %v1177 = vld [vmem:[%s5 + $0x50] sm:$0xff]
  %v1178 = vld [vmem:[%s5 + $0x58] sm:$0xff]
  %v1180 = vsel %vm1028, %v992, 0
  %1182 = vmatprep.subr.mxu0 0.0
  %1183 = vmatpush1.msra.mxu0 0.0
  %1184 = vmatprep.subr.mxu0 0.0
  %1185 = vmatpush1.msra.mxu0 0.0
  %1186 = vmatprep.subr.mxu0 0.0
  %1187 = vmatpush1.msra.mxu0 0.0
  %1188 = vmatprep.subr.mxu0 0.0
  %1189 = vmatpush1.msra.mxu0 0.0
  %1190 = vmatprep.subr.mxu0 0.0
  %1191 = vmatpush1.msra.mxu0 0.0
  %1192 = vmatprep.subr.mxu0 0.0
  %1193 = vmatpush1.msra.mxu0 0.0
  %1194 = vmatprep.subr.mxu0 0.0
  %1195 = vmatpush1.msra.mxu0 0.0
  %1196 = vmatprep.subr.mxu0 0.0
  %1197 = vmatpush1.msra.mxu0 0.0
  %1198 = vmatprep.subr.mxu0 0.0
  %1199 = vmatpush1.msra.mxu0 0.0
  %1200 = vmatprep.subr.mxu0 0.0
  %1201 = vmatpush1.msra.mxu0 0.0
  %1202 = vmatprep.subr.mxu0 0.0
  %1203 = vmatpush1.msra.mxu0 0.0
  %1204 = vmatprep.subr.mxu0 0.0
  %1205 = vmatpush1.msra.mxu0 0.0
  %1206 = vmatprep.subr.mxu0 0.0
  %1207 = vmatpush1.msra.mxu0 %v1178
  %1208 = vmatprep.subr.mxu0 0.0
  %1209 = vmatpush1.msra.mxu0 %v1177
  %1210 = vmatprep.subr.mxu0 0.0
  %1211 = vmatpush1.msra.mxu0 %v1176
  %1212 = vmatprep.subr.mxu0 0.0
  %1213 = vmatpush1.msra.mxu0 %v1175
  %1214 = vmatprep.subr.mxu0 0.0
  %1215 = vmatpush2.msra.mxu0 0.0
  %1216 = vmatprep.subr.mxu0 0.0
  %1217 = vmatpush2.msra.mxu0 0.0
  %1218 = vmatprep.subr.mxu0 0.0
  %1219 = vmatpush2.msra.mxu0 0.0
  %1220 = vmatprep.subr.mxu0 0.0
  %1221 = vmatpush2.msra.mxu0 0.0
  %1222 = vmatprep.subr.mxu0 0.0
  %1223 = vmatpush2.msra.mxu0 0.0
  %1224 = vmatprep.subr.mxu0 0.0
  %1225 = vmatpush2.msra.mxu0 0.0
  %1226 = vmatprep.subr.mxu0 0.0
  %1227 = vmatpush2.msra.mxu0 0.0
  %1228 = vmatprep.subr.mxu0 0.0
  %1229 = vmatpush2.msra.mxu0 0.0
  %1230 = vmatprep.subr.mxu0 0.0
  %1231 = vmatpush2.msra.mxu0 0.0
  %1232 = vmatprep.subr.mxu0 0.0
  %1233 = vmatpush2.msra.mxu0 0.0
  %1234 = vmatprep.subr.mxu0 0.0
  %1235 = vmatpush2.msra.mxu0 0.0
  %1236 = vmatprep.subr.mxu0 0.0
  %1237 = vmatpush2.msra.mxu0 0.0
  %1238 = vmatprep.subr.mxu0 0.0
  %1239 = vmatpush2.msra.mxu0 0.0
  %1240 = vmatprep.subr.mxu0 0.0
  %1241 = vmatpush2.msra.mxu0 0.0
  %1242 = vmatprep.subr.mxu0 0.0
  %1243 = vmatpush2.msra.mxu0 0.0
  %1244 = vmatprep.subr.mxu0 0.0
  %1245 = vmatpush2.msra.mxu0 0.0
  %1246 = vmatprep.mubr.f32.mxu0 0.0
  %1247 = vmatmul.mubr.f32.gmra.mxu0 %v1180
  %v1248 = vpop.f32.mrf.mxu0
  %v1249 = vadd.f32 0.0, %v1248
  %v1250 = vpop.f32.mrf.mxu0
  %1251 = vdwg.mxu0
  %v1252 = vadd.f32 %v1172, %v1249
  %v1253 = vld [vmem:[%s5 + $0x60] sm:$0xff]
  %v1254 = vld [vmem:[%s5 + $0x68] sm:$0xff]
  %v1255 = vld [vmem:[%s5 + $0x70] sm:$0xff]
  %v1256 = vld [vmem:[%s5 + $0x78] sm:$0xff]
  %v1258 = vsel %vm1028, %v997, 0
  %1260 = vmatprep.subr.mxu0 0.0
  %1261 = vmatpush1.msra.mxu0 0.0
  %1262 = vmatprep.subr.mxu0 0.0
  %1263 = vmatpush1.msra.mxu0 0.0
  %1264 = vmatprep.subr.mxu0 0.0
  %1265 = vmatpush1.msra.mxu0 0.0
  %1266 = vmatprep.subr.mxu0 0.0
  %1267 = vmatpush1.msra.mxu0 0.0
  %1268 = vmatprep.subr.mxu0 0.0
  %1269 = vmatpush1.msra.mxu0 0.0
  %1270 = vmatprep.subr.mxu0 0.0
  %1271 = vmatpush1.msra.mxu0 0.0
  %1272 = vmatprep.subr.mxu0 0.0
  %1273 = vmatpush1.msra.mxu0 0.0
  %1274 = vmatprep.subr.mxu0 0.0
  %1275 = vmatpush1.msra.mxu0 0.0
  %1276 = vmatprep.subr.mxu0 0.0
  %1277 = vmatpush1.msra.mxu0 0.0
  %1278 = vmatprep.subr.mxu0 0.0
  %1279 = vmatpush1.msra.mxu0 0.0
  %1280 = vmatprep.subr.mxu0 0.0
  %1281 = vmatpush1.msra.mxu0 0.0
  %1282 = vmatprep.subr.mxu0 0.0
  %1283 = vmatpush1.msra.mxu0 0.0
  %1284 = vmatprep.subr.mxu0 0.0
  %1285 = vmatpush1.msra.mxu0 %v1256
  %1286 = vmatprep.subr.mxu0 0.0
  %1287 = vmatpush1.msra.mxu0 %v1255
  %1288 = vmatprep.subr.mxu0 0.0
  %1289 = vmatpush1.msra.mxu0 %v1254
  %1290 = vmatprep.subr.mxu0 0.0
  %1291 = vmatpush1.msra.mxu0 %v1253
  %1292 = vmatprep.subr.mxu0 0.0
  %1293 = vmatpush2.msra.mxu0 0.0
  %1294 = vmatprep.subr.mxu0 0.0
  %1295 = vmatpush2.msra.mxu0 0.0
  %1296 = vmatprep.subr.mxu0 0.0
  %1297 = vmatpush2.msra.mxu0 0.0
  %1298 = vmatprep.subr.mxu0 0.0
  %1299 = vmatpush2.msra.mxu0 0.0
  %1300 = vmatprep.subr.mxu0 0.0
  %1301 = vmatpush2.msra.mxu0 0.0
  %1302 = vmatprep.subr.mxu0 0.0
  %1303 = vmatpush2.msra.mxu0 0.0
  %1304 = vmatprep.subr.mxu0 0.0
  %1305 = vmatpush2.msra.mxu0 0.0
  %1306 = vmatprep.subr.mxu0 0.0
  %1307 = vmatpush2.msra.mxu0 0.0
  %1308 = vmatprep.subr.mxu0 0.0
  %1309 = vmatpush2.msra.mxu0 0.0
  %1310 = vmatprep.subr.mxu0 0.0
  %1311 = vmatpush2.msra.mxu0 0.0
  %1312 = vmatprep.subr.mxu0 0.0
  %1313 = vmatpush2.msra.mxu0 0.0
  %1314 = vmatprep.subr.mxu0 0.0
  %1315 = vmatpush2.msra.mxu0 0.0
  %1316 = vmatprep.subr.mxu0 0.0
  %1317 = vmatpush2.msra.mxu0 0.0
  %1318 = vmatprep.subr.mxu0 0.0
  %1319 = vmatpush2.msra.mxu0 0.0
  %1320 = vmatprep.subr.mxu0 0.0
  %1321 = vmatpush2.msra.mxu0 0.0
  %1322 = vmatprep.subr.mxu0 0.0
  %1323 = vmatpush2.msra.mxu0 0.0
  %1324 = vmatprep.mubr.f32.mxu0 0.0
  %1325 = vmatmul.mubr.f32.gmra.mxu0 %v1258
  %v1326 = vpop.f32.mrf.mxu0
  %v1327 = vadd.f32 0.0, %v1326
  %v1328 = vpop.f32.mrf.mxu0
  %1329 = vdwg.mxu0
  %v1330 = vadd.f32 %v1252, %v1327
  %v1331 = vld [vmem:[%s5 + $0x80] sm:$0xff]
  %v1332 = vld [vmem:[%s5 + $0x88] sm:$0xff]
  %v1333 = vld [vmem:[%s5 + $0x90] sm:$0xff]
  %v1334 = vld [vmem:[%s5 + $0x98] sm:$0xff]
  %v1336 = vsel %vm1028, %v1002, 0
  %1338 = vmatprep.subr.mxu0 0.0
  %1339 = vmatpush1.msra.mxu0 0.0
  %1340 = vmatprep.subr.mxu0 0.0
  %1341 = vmatpush1.msra.mxu0 0.0
  %1342 = vmatprep.subr.mxu0 0.0
  %1343 = vmatpush1.msra.mxu0 0.0
  %1344 = vmatprep.subr.mxu0 0.0
  %1345 = vmatpush1.msra.mxu0 0.0
  %1346 = vmatprep.subr.mxu0 0.0
  %1347 = vmatpush1.msra.mxu0 0.0
  %1348 = vmatprep.subr.mxu0 0.0
  %1349 = vmatpush1.msra.mxu0 0.0
  %1350 = vmatprep.subr.mxu0 0.0
  %1351 = vmatpush1.msra.mxu0 0.0
  %1352 = vmatprep.subr.mxu0 0.0
  %1353 = vmatpush1.msra.mxu0 0.0
  %1354 = vmatprep.subr.mxu0 0.0
  %1355 = vmatpush1.msra.mxu0 0.0
  %1356 = vmatprep.subr.mxu0 0.0
  %1357 = vmatpush1.msra.mxu0 0.0
  %1358 = vmatprep.subr.mxu0 0.0
  %1359 = vmatpush1.msra.mxu0 0.0
  %1360 = vmatprep.subr.mxu0 0.0
  %1361 = vmatpush1.msra.mxu0 0.0
  %1362 = vmatprep.subr.mxu0 0.0
  %1363 = vmatpush1.msra.mxu0 %v1334
  %1364 = vmatprep.subr.mxu0 0.0
  %1365 = vmatpush1.msra.mxu0 %v1333
  %1366 = vmatprep.subr.mxu0 0.0
  %1367 = vmatpush1.msra.mxu0 %v1332
  %1368 = vmatprep.subr.mxu0 0.0
  %1369 = vmatpush1.msra.mxu0 %v1331
  %1370 = vmatprep.subr.mxu0 0.0
  %1371 = vmatpush2.msra.mxu0 0.0
  %1372 = vmatprep.subr.mxu0 0.0
  %1373 = vmatpush2.msra.mxu0 0.0
  %1374 = vmatprep.subr.mxu0 0.0
  %1375 = vmatpush2.msra.mxu0 0.0
  %1376 = vmatprep.subr.mxu0 0.0
  %1377 = vmatpush2.msra.mxu0 0.0
  %1378 = vmatprep.subr.mxu0 0.0
  %1379 = vmatpush2.msra.mxu0 0.0
  %1380 = vmatprep.subr.mxu0 0.0
  %1381 = vmatpush2.msra.mxu0 0.0
  %1382 = vmatprep.subr.mxu0 0.0
  %1383 = vmatpush2.msra.mxu0 0.0
  %1384 = vmatprep.subr.mxu0 0.0
  %1385 = vmatpush2.msra.mxu0 0.0
  %1386 = vmatprep.subr.mxu0 0.0
  %1387 = vmatpush2.msra.mxu0 0.0
  %1388 = vmatprep.subr.mxu0 0.0
  %1389 = vmatpush2.msra.mxu0 0.0
  %1390 = vmatprep.subr.mxu0 0.0
  %1391 = vmatpush2.msra.mxu0 0.0
  %1392 = vmatprep.subr.mxu0 0.0
  %1393 = vmatpush2.msra.mxu0 0.0
  %1394 = vmatprep.subr.mxu0 0.0
  %1395 = vmatpush2.msra.mxu0 0.0
  %1396 = vmatprep.subr.mxu0 0.0
  %1397 = vmatpush2.msra.mxu0 0.0
  %1398 = vmatprep.subr.mxu0 0.0
  %1399 = vmatpush2.msra.mxu0 0.0
  %1400 = vmatprep.subr.mxu0 0.0
  %1401 = vmatpush2.msra.mxu0 0.0
  %1402 = vmatprep.mubr.f32.mxu0 0.0
  %1403 = vmatmul.mubr.f32.gmra.mxu0 %v1336
  %v1404 = vpop.f32.mrf.mxu0
  %v1405 = vadd.f32 0.0, %v1404
  %v1406 = vpop.f32.mrf.mxu0
  %1407 = vdwg.mxu0
  %v1408 = vadd.f32 %v1330, %v1405
  %v1409 = vld [vmem:[%s5 + $0xa0] sm:$0xff]
  %v1410 = vld [vmem:[%s5 + $0xa8] sm:$0xff]
  %v1411 = vld [vmem:[%s5 + $0xb0] sm:$0xff]
  %v1412 = vld [vmem:[%s5 + $0xb8] sm:$0xff]
  %v1414 = vsel %vm1028, %v1007, 0
  %1416 = vmatprep.subr.mxu0 0.0
  %1417 = vmatpush1.msra.mxu0 0.0
  %1418 = vmatprep.subr.mxu0 0.0
  %1419 = vmatpush1.msra.mxu0 0.0
  %1420 = vmatprep.subr.mxu0 0.0
  %1421 = vmatpush1.msra.mxu0 0.0
  %1422 = vmatprep.subr.mxu0 0.0
  %1423 = vmatpush1.msra.mxu0 0.0
  %1424 = vmatprep.subr.mxu0 0.0
  %1425 = vmatpush1.msra.mxu0 0.0
  %1426 = vmatprep.subr.mxu0 0.0
  %1427 = vmatpush1.msra.mxu0 0.0
  %1428 = vmatprep.subr.mxu0 0.0
  %1429 = vmatpush1.msra.mxu0 0.0
  %1430 = vmatprep.subr.mxu0 0.0
  %1431 = vmatpush1.msra.mxu0 0.0
  %1432 = vmatprep.subr.mxu0 0.0
  %1433 = vmatpush1.msra.mxu0 0.0
  %1434 = vmatprep.subr.mxu0 0.0
  %1435 = vmatpush1.msra.mxu0 0.0
  %1436 = vmatprep.subr.mxu0 0.0
  %1437 = vmatpush1.msra.mxu0 0.0
  %1438 = vmatprep.subr.mxu0 0.0
  %1439 = vmatpush1.msra.mxu0 0.0
  %1440 = vmatprep.subr.mxu0 0.0
  %1441 = vmatpush1.msra.mxu0 %v1412
  %1442 = vmatprep.subr.mxu0 0.0
  %1443 = vmatpush1.msra.mxu0 %v1411
  %1444 = vmatprep.subr.mxu0 0.0
  %1445 = vmatpush1.msra.mxu0 %v1410
  %1446 = vmatprep.subr.mxu0 0.0
  %1447 = vmatpush1.msra.mxu0 %v1409
  %1448 = vmatprep.subr.mxu0 0.0
  %1449 = vmatpush2.msra.mxu0 0.0
  %1450 = vmatprep.subr.mxu0 0.0
  %1451 = vmatpush2.msra.mxu0 0.0
  %1452 = vmatprep.subr.mxu0 0.0
  %1453 = vmatpush2.msra.mxu0 0.0
  %1454 = vmatprep.subr.mxu0 0.0
  %1455 = vmatpush2.msra.mxu0 0.0
  %1456 = vmatprep.subr.mxu0 0.0
  %1457 = vmatpush2.msra.mxu0 0.0
  %1458 = vmatprep.subr.mxu0 0.0
  %1459 = vmatpush2.msra.mxu0 0.0
  %1460 = vmatprep.subr.mxu0 0.0
  %1461 = vmatpush2.msra.mxu0 0.0
  %1462 = vmatprep.subr.mxu0 0.0
  %1463 = vmatpush2.msra.mxu0 0.0
  %1464 = vmatprep.subr.mxu0 0.0
  %1465 = vmatpush2.msra.mxu0 0.0
  %1466 = vmatprep.subr.mxu0 0.0
  %1467 = vmatpush2.msra.mxu0 0.0
  %1468 = vmatprep.subr.mxu0 0.0
  %1469 = vmatpush2.msra.mxu0 0.0
  %1470 = vmatprep.subr.mxu0 0.0
  %1471 = vmatpush2.msra.mxu0 0.0
  %1472 = vmatprep.subr.mxu0 0.0
  %1473 = vmatpush2.msra.mxu0 0.0
  %1474 = vmatprep.subr.mxu0 0.0
  %1475 = vmatpush2.msra.mxu0 0.0
  %1476 = vmatprep.subr.mxu0 0.0
  %1477 = vmatpush2.msra.mxu0 0.0
  %1478 = vmatprep.subr.mxu0 0.0
  %1479 = vmatpush2.msra.mxu0 0.0
  %1480 = vmatprep.mubr.f32.mxu0 0.0
  %1481 = vmatmul.mubr.f32.gmra.mxu0 %v1414
  %v1482 = vpop.f32.mrf.mxu0
  %v1483 = vadd.f32 0.0, %v1482
  %v1484 = vpop.f32.mrf.mxu0
  %1485 = vdwg.mxu0
  %v1486 = vadd.f32 %v1408, %v1483
  %v1487 = vld [vmem:[%s5 + $0xc0] sm:$0xff]
  %v1488 = vld [vmem:[%s5 + $0xc8] sm:$0xff]
  %v1489 = vld [vmem:[%s5 + $0xd0] sm:$0xff]
  %v1490 = vld [vmem:[%s5 + $0xd8] sm:$0xff]
  %v1492 = vsel %vm1028, %v1012, 0
  %1494 = vmatprep.subr.mxu0 0.0
  %1495 = vmatpush1.msra.mxu0 0.0
  %1496 = vmatprep.subr.mxu0 0.0
  %1497 = vmatpush1.msra.mxu0 0.0
  %1498 = vmatprep.subr.mxu0 0.0
  %1499 = vmatpush1.msra.mxu0 0.0
  %1500 = vmatprep.subr.mxu0 0.0
  %1501 = vmatpush1.msra.mxu0 0.0
  %1502 = vmatprep.subr.mxu0 0.0
  %1503 = vmatpush1.msra.mxu0 0.0
  %1504 = vmatprep.subr.mxu0 0.0
  %1505 = vmatpush1.msra.mxu0 0.0
  %1506 = vmatprep.subr.mxu0 0.0
  %1507 = vmatpush1.msra.mxu0 0.0
  %1508 = vmatprep.subr.mxu0 0.0
  %1509 = vmatpush1.msra.mxu0 0.0
  %1510 = vmatprep.subr.mxu0 0.0
  %1511 = vmatpush1.msra.mxu0 0.0
  %1512 = vmatprep.subr.mxu0 0.0
  %1513 = vmatpush1.msra.mxu0 0.0
  %1514 = vmatprep.subr.mxu0 0.0
  %1515 = vmatpush1.msra.mxu0 0.0
  %1516 = vmatprep.subr.mxu0 0.0
  %1517 = vmatpush1.msra.mxu0 0.0
  %1518 = vmatprep.subr.mxu0 0.0
  %1519 = vmatpush1.msra.mxu0 %v1490
  %1520 = vmatprep.subr.mxu0 0.0
  %1521 = vmatpush1.msra.mxu0 %v1489
  %1522 = vmatprep.subr.mxu0 0.0
  %1523 = vmatpush1.msra.mxu0 %v1488
  %1524 = vmatprep.subr.mxu0 0.0
  %1525 = vmatpush1.msra.mxu0 %v1487
  %1526 = vmatprep.subr.mxu0 0.0
  %1527 = vmatpush2.msra.mxu0 0.0
  %1528 = vmatprep.subr.mxu0 0.0
  %1529 = vmatpush2.msra.mxu0 0.0
  %1530 = vmatprep.subr.mxu0 0.0
  %1531 = vmatpush2.msra.mxu0 0.0
  %1532 = vmatprep.subr.mxu0 0.0
  %1533 = vmatpush2.msra.mxu0 0.0
  %1534 = vmatprep.subr.mxu0 0.0
  %1535 = vmatpush2.msra.mxu0 0.0
  %1536 = vmatprep.subr.mxu0 0.0
  %1537 = vmatpush2.msra.mxu0 0.0
  %1538 = vmatprep.subr.mxu0 0.0
  %1539 = vmatpush2.msra.mxu0 0.0
  %1540 = vmatprep.subr.mxu0 0.0
  %1541 = vmatpush2.msra.mxu0 0.0
  %1542 = vmatprep.subr.mxu0 0.0
  %1543 = vmatpush2.msra.mxu0 0.0
  %1544 = vmatprep.subr.mxu0 0.0
  %1545 = vmatpush2.msra.mxu0 0.0
  %1546 = vmatprep.subr.mxu0 0.0
  %1547 = vmatpush2.msra.mxu0 0.0
  %1548 = vmatprep.subr.mxu0 0.0
  %1549 = vmatpush2.msra.mxu0 0.0
  %1550 = vmatprep.subr.mxu0 0.0
  %1551 = vmatpush2.msra.mxu0 0.0
  %1552 = vmatprep.subr.mxu0 0.0
  %1553 = vmatpush2.msra.mxu0 0.0
  %1554 = vmatprep.subr.mxu0 0.0
  %1555 = vmatpush2.msra.mxu0 0.0
  %1556 = vmatprep.subr.mxu0 0.0
  %1557 = vmatpush2.msra.mxu0 0.0
  %1558 = vmatprep.mubr.f32.mxu0 0.0
  %1559 = vmatmul.mubr.f32.gmra.mxu0 %v1492
  %v1560 = vpop.f32.mrf.mxu0
  %v1561 = vadd.f32 0.0, %v1560
  %v1562 = vpop.f32.mrf.mxu0
  %1563 = vdwg.mxu0
  %v1564 = vadd.f32 %v1486, %v1561
  %v1565 = vld [vmem:[%s5 + $0xe0] sm:$0xff]
  %v1566 = vld [vmem:[%s5 + $0xe8] sm:$0xff]
  %v1567 = vld [vmem:[%s5 + $0xf0] sm:$0xff]
  %v1568 = vld [vmem:[%s5 + $0xf8] sm:$0xff]
  %v1570 = vsel %vm1028, %v1017, 0
  %1572 = vmatprep.subr.mxu0 0.0
  %1573 = vmatpush1.msra.mxu0 0.0
  %1574 = vmatprep.subr.mxu0 0.0
  %1575 = vmatpush1.msra.mxu0 0.0
  %1576 = vmatprep.subr.mxu0 0.0
  %1577 = vmatpush1.msra.mxu0 0.0
  %1578 = vmatprep.subr.mxu0 0.0
  %1579 = vmatpush1.msra.mxu0 0.0
  %1580 = vmatprep.subr.mxu0 0.0
  %1581 = vmatpush1.msra.mxu0 0.0
  %1582 = vmatprep.subr.mxu0 0.0
  %1583 = vmatpush1.msra.mxu0 0.0
  %1584 = vmatprep.subr.mxu0 0.0
  %1585 = vmatpush1.msra.mxu0 0.0
  %1586 = vmatprep.subr.mxu0 0.0
  %1587 = vmatpush1.msra.mxu0 0.0
  %1588 = vmatprep.subr.mxu0 0.0
  %1589 = vmatpush1.msra.mxu0 0.0
  %1590 = vmatprep.subr.mxu0 0.0
  %1591 = vmatpush1.msra.mxu0 0.0
  %1592 = vmatprep.subr.mxu0 0.0
  %1593 = vmatpush1.msra.mxu0 0.0
  %1594 = vmatprep.subr.mxu0 0.0
  %1595 = vmatpush1.msra.mxu0 0.0
  %1596 = vmatprep.subr.mxu0 0.0
  %1597 = vmatpush1.msra.mxu0 %v1568
  %1598 = vmatprep.subr.mxu0 0.0
  %1599 = vmatpush1.msra.mxu0 %v1567
  %1600 = vmatprep.subr.mxu0 0.0
  %1601 = vmatpush1.msra.mxu0 %v1566
  %1602 = vmatprep.subr.mxu0 0.0
  %1603 = vmatpush1.msra.mxu0 %v1565
  %1604 = vmatprep.subr.mxu0 0.0
  %1605 = vmatpush2.msra.mxu0 0.0
  %1606 = vmatprep.subr.mxu0 0.0
  %1607 = vmatpush2.msra.mxu0 0.0
  %1608 = vmatprep.subr.mxu0 0.0
  %1609 = vmatpush2.msra.mxu0 0.0
  %1610 = vmatprep.subr.mxu0 0.0
  %1611 = vmatpush2.msra.mxu0 0.0
  %1612 = vmatprep.subr.mxu0 0.0
  %1613 = vmatpush2.msra.mxu0 0.0
  %1614 = vmatprep.subr.mxu0 0.0
  %1615 = vmatpush2.msra.mxu0 0.0
  %1616 = vmatprep.subr.mxu0 0.0
  %1617 = vmatpush2.msra.mxu0 0.0
  %1618 = vmatprep.subr.mxu0 0.0
  %1619 = vmatpush2.msra.mxu0 0.0
  %1620 = vmatprep.subr.mxu0 0.0
  %1621 = vmatpush2.msra.mxu0 0.0
  %1622 = vmatprep.subr.mxu0 0.0
  %1623 = vmatpush2.msra.mxu0 0.0
  %1624 = vmatprep.subr.mxu0 0.0
  %1625 = vmatpush2.msra.mxu0 0.0
  %1626 = vmatprep.subr.mxu0 0.0
  %1627 = vmatpush2.msra.mxu0 0.0
  %1628 = vmatprep.subr.mxu0 0.0
  %1629 = vmatpush2.msra.mxu0 0.0
  %1630 = vmatprep.subr.mxu0 0.0
  %1631 = vmatpush2.msra.mxu0 0.0
  %1632 = vmatprep.subr.mxu0 0.0
  %1633 = vmatpush2.msra.mxu0 0.0
  %1634 = vmatprep.subr.mxu0 0.0
  %1635 = vmatpush2.msra.mxu0 0.0
  %1636 = vmatprep.mubr.f32.mxu0 0.0
  %1637 = vmatmul.mubr.f32.gmra.mxu0 %v1570
  %v1638 = vpop.f32.mrf.mxu0
  %v1639 = vadd.f32 0.0, %v1638
  %v1640 = vpop.f32.mrf.mxu0
  %1641 = vdwg.mxu0
  %v1642 = vadd.f32 %v1564, %v1639
  %v1643 = vld [vmem:[%s8] sm:$0x1]
  %v1644 = vlaneseq
  %v1645 = vshrl.u32 %v1644, 7
  %v1646 = vsub.s32 0, %v1645
  %v1647 = vrot.slane %v1643, %v1646
  %v1648 = vadd.f32 %v1642, %v1647
  %vm1649 = vcmp.gt.f32.partialorder %v1648, 0.0
  %v1650 = vmul.f32 %v1648, 0.01
  %v1651 = vsel %vm1649, %v1648, %v1650
  %v1652 = vld [vmem:[%s6] sm:$0xff]
  %v1653 = vld [vmem:[%s6 + $0x8] sm:$0xff]
  %v1654 = vld [vmem:[%s6 + $0x10] sm:$0xff]
  %v1655 = vld [vmem:[%s6 + $0x18] sm:$0xff]
  %v1656 = vld [vmem:[%s6 + $0x20] sm:$0xff]
  %v1657 = vld [vmem:[%s6 + $0x28] sm:$0xff]
  %v1658 = vld [vmem:[%s6 + $0x30] sm:$0xff]
  %v1659 = vld [vmem:[%s6 + $0x38] sm:$0xff]
  %v1660 = vld [vmem:[%s8 + $0x1] sm:$0x1]
  %v1661 = vlaneseq
  %v1662 = vshrl.u32 %v1661, 7
  %v1663 = vsub.s32 0, %v1662
  %v1664 = vrot.slane %v1660, %v1663
  %v1666 = vsel %vm100, %v1651, 0
  %1668 = vmatprep.subr.mxu0 0.0
  %1669 = vmatpush1.msra.mxu0 0.0
  %1670 = vmatprep.subr.mxu0 0.0
  %1671 = vmatpush1.msra.mxu0 0.0
  %1672 = vmatprep.subr.mxu0 0.0
  %1673 = vmatpush1.msra.mxu0 0.0
  %1674 = vmatprep.subr.mxu0 0.0
  %1675 = vmatpush1.msra.mxu0 0.0
  %1676 = vmatprep.subr.mxu0 0.0
  %1677 = vmatpush1.msra.mxu0 0.0
  %1678 = vmatprep.subr.mxu0 0.0
  %1679 = vmatpush1.msra.mxu0 0.0
  %1680 = vmatprep.subr.mxu0 0.0
  %1681 = vmatpush1.msra.mxu0 0.0
  %1682 = vmatprep.subr.mxu0 0.0
  %1683 = vmatpush1.msra.mxu0 0.0
  %1684 = vmatprep.subr.mxu0 0.0
  %1685 = vmatpush1.msra.mxu0 %v1659
  %1686 = vmatprep.subr.mxu0 0.0
  %1687 = vmatpush1.msra.mxu0 %v1658
  %1688 = vmatprep.subr.mxu0 0.0
  %1689 = vmatpush1.msra.mxu0 %v1657
  %1690 = vmatprep.subr.mxu0 0.0
  %1691 = vmatpush1.msra.mxu0 %v1656
  %1692 = vmatprep.subr.mxu0 0.0
  %1693 = vmatpush1.msra.mxu0 %v1655
  %1694 = vmatprep.subr.mxu0 0.0
  %1695 = vmatpush1.msra.mxu0 %v1654
  %1696 = vmatprep.subr.mxu0 0.0
  %1697 = vmatpush1.msra.mxu0 %v1653
  %1698 = vmatprep.subr.mxu0 0.0
  %1699 = vmatpush1.msra.mxu0 %v1652
  %1700 = vmatprep.subr.mxu0 0.0
  %1701 = vmatpush2.msra.mxu0 0.0
  %1702 = vmatprep.subr.mxu0 0.0
  %1703 = vmatpush2.msra.mxu0 0.0
  %1704 = vmatprep.subr.mxu0 0.0
  %1705 = vmatpush2.msra.mxu0 0.0
  %1706 = vmatprep.subr.mxu0 0.0
  %1707 = vmatpush2.msra.mxu0 0.0
  %1708 = vmatprep.subr.mxu0 0.0
  %1709 = vmatpush2.msra.mxu0 0.0
  %1710 = vmatprep.subr.mxu0 0.0
  %1711 = vmatpush2.msra.mxu0 0.0
  %1712 = vmatprep.subr.mxu0 0.0
  %1713 = vmatpush2.msra.mxu0 0.0
  %1714 = vmatprep.subr.mxu0 0.0
  %1715 = vmatpush2.msra.mxu0 0.0
  %1716 = vmatprep.subr.mxu0 0.0
  %1717 = vmatpush2.msra.mxu0 0.0
  %1718 = vmatprep.subr.mxu0 0.0
  %1719 = vmatpush2.msra.mxu0 0.0
  %1720 = vmatprep.subr.mxu0 0.0
  %1721 = vmatpush2.msra.mxu0 0.0
  %1722 = vmatprep.subr.mxu0 0.0
  %1723 = vmatpush2.msra.mxu0 0.0
  %1724 = vmatprep.subr.mxu0 0.0
  %1725 = vmatpush2.msra.mxu0 0.0
  %1726 = vmatprep.subr.mxu0 0.0
  %1727 = vmatpush2.msra.mxu0 0.0
  %1728 = vmatprep.subr.mxu0 0.0
  %1729 = vmatpush2.msra.mxu0 0.0
  %1730 = vmatprep.subr.mxu0 0.0
  %1731 = vmatpush2.msra.mxu0 0.0
  %1732 = vmatprep.mubr.f32.mxu0 0.0
  %1733 = vmatmul.mubr.f32.gmra.mxu0 %v1666
  %v1734 = vpop.f32.mrf.mxu0
  %v1735 = vadd.f32 %v1664, %v1734
  %v1736 = vpop.f32.mrf.mxu0
  %1737 = vdwg.mxu0
  %vm1738 = vcmp.gt.f32.partialorder %v1735, 0.0
  %v1739 = vmul.f32 %v1735, 0.01
  %v1740 = vsel %vm1738, %v1735, %v1739
  %v1741 = vld [vmem:[%s7] sm:$0xff]
  %v1742 = vld [vmem:[%s7 + $0x8] sm:$0xff]
  %v1743 = vld [vmem:[%s7 + $0x10] sm:$0xff]
  %v1744 = vld [vmem:[%s7 + $0x18] sm:$0xff]
  %v1745 = vld [vmem:[%s8 + $0x2] sm:$0x1]
  %v1746 = vlaneseq
  %v1747 = vshrl.u32 %v1746, 7
  %v1748 = vsub.s32 0, %v1747
  %v1749 = vrot.slane %v1745, %v1748
  %v1751 = vsel %vm1028, %v1740, 0
  %1753 = vmatprep.subr.mxu0 0.0
  %1754 = vmatpush1.msra.mxu0 0.0
  %1755 = vmatprep.subr.mxu0 0.0
  %1756 = vmatpush1.msra.mxu0 0.0
  %1757 = vmatprep.subr.mxu0 0.0
  %1758 = vmatpush1.msra.mxu0 0.0
  %1759 = vmatprep.subr.mxu0 0.0
  %1760 = vmatpush1.msra.mxu0 0.0
  %1761 = vmatprep.subr.mxu0 0.0
  %1762 = vmatpush1.msra.mxu0 0.0
  %1763 = vmatprep.subr.mxu0 0.0
  %1764 = vmatpush1.msra.mxu0 0.0
  %1765 = vmatprep.subr.mxu0 0.0
  %1766 = vmatpush1.msra.mxu0 0.0
  %1767 = vmatprep.subr.mxu0 0.0
  %1768 = vmatpush1.msra.mxu0 0.0
  %1769 = vmatprep.subr.mxu0 0.0
  %1770 = vmatpush1.msra.mxu0 0.0
  %1771 = vmatprep.subr.mxu0 0.0
  %1772 = vmatpush1.msra.mxu0 0.0
  %1773 = vmatprep.subr.mxu0 0.0
  %1774 = vmatpush1.msra.mxu0 0.0
  %1775 = vmatprep.subr.mxu0 0.0
  %1776 = vmatpush1.msra.mxu0 0.0
  %1777 = vmatprep.subr.mxu0 0.0
  %1778 = vmatpush1.msra.mxu0 %v1744
  %1779 = vmatprep.subr.mxu0 0.0
  %1780 = vmatpush1.msra.mxu0 %v1743
  %1781 = vmatprep.subr.mxu0 0.0
  %1782 = vmatpush1.msra.mxu0 %v1742
  %1783 = vmatprep.subr.mxu0 0.0
  %1784 = vmatpush1.msra.mxu0 %v1741
  %1785 = vmatprep.subr.mxu0 0.0
  %1786 = vmatpush2.msra.mxu0 0.0
  %1787 = vmatprep.subr.mxu0 0.0
  %1788 = vmatpush2.msra.mxu0 0.0
  %1789 = vmatprep.subr.mxu0 0.0
  %1790 = vmatpush2.msra.mxu0 0.0
  %1791 = vmatprep.subr.mxu0 0.0
  %1792 = vmatpush2.msra.mxu0 0.0
  %1793 = vmatprep.subr.mxu0 0.0
  %1794 = vmatpush2.msra.mxu0 0.0
  %1795 = vmatprep.subr.mxu0 0.0
  %1796 = vmatpush2.msra.mxu0 0.0
  %1797 = vmatprep.subr.mxu0 0.0
  %1798 = vmatpush2.msra.mxu0 0.0
  %1799 = vmatprep.subr.mxu0 0.0
  %1800 = vmatpush2.msra.mxu0 0.0
  %1801 = vmatprep.subr.mxu0 0.0
  %1802 = vmatpush2.msra.mxu0 0.0
  %1803 = vmatprep.subr.mxu0 0.0
  %1804 = vmatpush2.msra.mxu0 0.0
  %1805 = vmatprep.subr.mxu0 0.0
  %1806 = vmatpush2.msra.mxu0 0.0
  %1807 = vmatprep.subr.mxu0 0.0
  %1808 = vmatpush2.msra.mxu0 0.0
  %1809 = vmatprep.subr.mxu0 0.0
  %1810 = vmatpush2.msra.mxu0 0.0
  %1811 = vmatprep.subr.mxu0 0.0
  %1812 = vmatpush2.msra.mxu0 0.0
  %1813 = vmatprep.subr.mxu0 0.0
  %1814 = vmatpush2.msra.mxu0 0.0
  %1815 = vmatprep.subr.mxu0 0.0
  %1816 = vmatpush2.msra.mxu0 0.0
  %1817 = vmatprep.mubr.f32.mxu0 0.0
  %1818 = vmatmul.mubr.f32.gmra.mxu0 %v1751
  %v1819 = vpop.f32.mrf.mxu0
  %v1820 = vadd.f32 %v1749, %v1819
  %v1821 = vpop.f32.mrf.mxu0
  %1822 = vdwg.mxu0
  %vm1823 = vcmask 7168
  %1824 = vst.msk [vmem:[%s9] sm:$0xff] %vm1823, %v1820
  // Predicated region
  $region38: #{fgn_forward.1} parent=0 // pred_check
    _
  $region39: #{fgn_forward.1} parent=0 // pred_check_branch
    %1826 = sbr.rel (0) target = $region41
  $region40: #{fgn_forward.1} parent=0 // pred_region
    _
  $region41: #{fgn_forward.1} parent=0 // pred_fallthru
    _
  // Predicated region
  $region42: #{fgn_forward.1} parent=0 // pred_check
    _
  $region43: #{fgn_forward.1} parent=0 // pred_check_branch
    %1828 = sbr.rel (0) target = $region45
  $region44: #{fgn_forward.1} parent=0 // pred_region
    _
  $region45: #{fgn_forward.1} parent=0 // pred_fallthru
    _

</llo_original>
